<compile_context>
chip_gen: v7x
topology: tpu7x:2x2x1
jax: 0.10.0
libtpu: 0.0.40
codegen_flags: <defaults>
</compile_context>

<pallas_src>
import functools

import jax
import jax.numpy as jnp
from jax.experimental import pallas as pl
from jax.experimental.pallas import tpu as pltpu


def _dense_block_kernel(*refs, n, bt, num_convs):
    """refs = (x, scale, shift, w1, b1, ..., wM, bM, out, bnp_scratch, feat_scratch).

    x_ref:       (Bt, C_in, N)      NCW block of Bt batch elements
    scale/shift: (C_in, 1)          folded BatchNorm affine
    w_i:         (3*C_out, C_in_i)  taps stacked along rows: [W_k0; W_k1; W_k2]
    b_i:         (C_out, 1)
    o_ref:       (Bt, C_total, N)   c5_dense block
    bnp_ref:     (C_in, Bt*(N+2))   zero-halo padded BN output (VMEM scratch)
    feat_ref:    (C_total-32, Bt*(N+2)) zero-halo dense feature slab (conv1..4)
    """
    f32 = jnp.float32
    x_ref, scale_ref, shift_ref = refs[0], refs[1], refs[2]
    wb_refs = refs[3:3 + 2 * num_convs]
    o_ref = refs[3 + 2 * num_convs]
    bnp_ref = refs[4 + 2 * num_convs]
    feat_ref = refs[5 + 2 * num_convs]

    p = n + 2                                   # padded segment width
    c_in0 = x_ref.shape[1]
    feat_rows = feat_ref.shape[0]

    # --- zero ONLY the halo columns of each segment -------------------------
    for b in range(bt):
        base = b * p
        for j in (base, base + n + 1):
            bnp_ref[:, j:j + 1] = jnp.zeros((c_in0, 1), f32)
            feat_ref[:, j:j + 1] = jnp.zeros((feat_rows, 1), f32)

    # --- BatchNorm (inference affine), written into segment interiors -------
    scale = scale_ref[...]
    shift = shift_ref[...]
    for b in range(bt):
        base = b * p
        bnp_ref[:, base + 1:base + 1 + n] = (
            x_ref[b].astype(f32) * scale + shift)

    # --- Dense block: conv_i reads the first c_in rows of the slab ----------
    col = 0
    for i in range(num_convs):
        w_ref, b_ref = wb_refs[2 * i], wb_refs[2 * i + 1]
        c_out = w_ref.shape[0] // 3
        c_in = w_ref.shape[1]
        src = bnp_ref[...] if i == 0 else feat_ref[0:c_in, :]
        # ONE MXU matmul per conv: (3*c_out, c_in) @ (c_in, Bt*(N+2)).
        y = jnp.dot(w_ref[...], src, preferred_element_type=f32)
        bias = b_ref[...]
        for b in range(bt):
            base = b * p
            acc = (y[0:c_out, base:base + n]
                   + y[c_out:2 * c_out, base + 1:base + 1 + n]
                   + y[2 * c_out:3 * c_out, base + 2:base + 2 + n]
                   + bias)
            c = jnp.maximum(acc, 0.0)                  # ReLU
            # "concat" (and the outer relu(cat(...)), identity on >=0 values)
            # becomes a direct write into the output block and the slab.
            o_ref[b, col:col + c_out, :] = c.astype(o_ref.dtype)
            if i + 1 < num_convs:                      # last conv: nobody reads it
                feat_ref[col:col + c_out, base + 1:base + 1 + n] = c
        col += c_out


def _pick_batch_tile(batch, n):
    """Pack Bt batch elements along lanes when N is small (lane density)."""
    if n + 2 >= 128:
        return 1
    cap = max(1, 512 // (n + 2))
    for d in range(min(batch, cap), 0, -1):
        if batch % d == 0:
            return d
    return 1


def dense_block1d(x, bn_gamma, bn_beta, bn_mean, bn_var, convs, *, eps=1e-5):
    """x: (B, C_in, N).  convs: list of (w (32, C_in_i, 3), b (32,)) PyTorch layout.

    Returns (B, 32 * len(convs), N) == Dense_Block1D.forward(x) with BatchNorm1d
    in inference mode (running statistics).
    """
    B, C_in, N = x.shape
    num_convs = len(convs)

    # Validate the dense-block channel structure: conv1 eats BN(x) (C_in ch);
    # conv_i (i>=2) eats cat(conv1..conv_{i-1}) = sum of previous out-channels.
    couts = [int(w.shape[0]) for (w, _) in convs]
    c_total = sum(couts)
    for idx, (w, _) in enumerate(convs):
        want_cin = C_in if idx == 0 else sum(couts[:idx])
        assert int(w.shape[2]) == 3 and int(w.shape[1]) == want_cin, (
            w.shape, want_cin)
    feat_rows = (c_total - couts[-1]) if num_convs > 1 else 8

    # Fold BN into per-channel scale/shift (inference mode), once, outside.
    scale = bn_gamma * jax.lax.rsqrt(bn_var.astype(jnp.float32) + eps)
    shift = bn_beta - bn_mean * scale
    scale = scale.reshape(C_in, 1).astype(jnp.float32)
    shift = shift.reshape(C_in, 1).astype(jnp.float32)

    # Pre-layout conv weights ONCE: (C_out, C_in, 3) -> stacked (3*C_out, C_in)
    # with row order [W_k0; W_k1; W_k2]; bias -> (C_out, 1).
    wb_args, wb_specs = [], []
    for (w, b) in convs:
        c_out, c_in_i, ksz = (int(s) for s in w.shape)
        w_stack = jnp.transpose(w, (2, 0, 1)).reshape(ksz * c_out, c_in_i)
        wb_args.append(w_stack.astype(jnp.float32))
        wb_args.append(b.reshape(c_out, 1).astype(jnp.float32))
        wb_specs.append(pl.BlockSpec((ksz * c_out, c_in_i), lambda i: (0, 0)))
        wb_specs.append(pl.BlockSpec((c_out, 1), lambda i: (0, 0)))

    bt = _pick_batch_tile(B, N)
    grid = (B // bt,)

    kernel = functools.partial(_dense_block_kernel, n=N, bt=bt,
                               num_convs=num_convs)

    out = pl.pallas_call(
        kernel,
        out_shape=jax.ShapeDtypeStruct((B, c_total, N), x.dtype),
        grid_spec=pltpu.PrefetchScalarGridSpec(
            num_scalar_prefetch=0,
            grid=grid,
            in_specs=[
                pl.BlockSpec((bt, C_in, N), lambda i: (i, 0, 0)),
                pl.BlockSpec((C_in, 1), lambda i: (0, 0)),
                pl.BlockSpec((C_in, 1), lambda i: (0, 0)),
            ] + wb_specs,
            out_specs=pl.BlockSpec((bt, c_total, N), lambda i: (i, 0, 0)),
            scratch_shapes=[
                pltpu.VMEM((C_in, bt * (N + 2)), jnp.float32),      # padded BN out
                pltpu.VMEM((feat_rows, bt * (N + 2)), jnp.float32), # dense slab
            ],
        ),
        compiler_params=pltpu.CompilerParams(
            dimension_semantics=("parallel",),
            vmem_limit_bytes=32 * 1024 * 1024),
    )(x, scale, shift, *wb_args)
    return out


# ---------------- pure-JAX reference (mirrors the PyTorch forward) ----------------
def _ref_forward(x, bn_gamma, bn_beta, bn_mean, bn_var, convs, eps=1e-5):
    scale = bn_gamma / jnp.sqrt(bn_var + eps)
    shift = bn_beta - bn_mean * scale
    h = x * scale[None, :, None] + shift[None, :, None]

    def conv(inp, w, b):
        y = jax.lax.conv_general_dilated(
            inp, w, window_strides=(1,), padding=[(1, 1)],
            dimension_numbers=("NCH", "OIH", "NCH"),
            precision=jax.lax.Precision.HIGHEST)
        return y + b[None, :, None]

    relu = lambda v: jnp.maximum(v, 0.0)
    (w1, b1), (w2, b2), (w3, b3), (w4, b4), (w5, b5) = convs
    c1 = relu(conv(h, w1, b1))
    c2 = relu(conv(c1, w2, b2))
    d2 = relu(jnp.concatenate([c1, c2], axis=1))
    c3 = relu(conv(d2, w3, b3))
    d3 = relu(jnp.concatenate([c1, c2, c3], axis=1))
    c4 = relu(conv(d3, w4, b4))
    d4 = relu(jnp.concatenate([c1, c2, c3, c4], axis=1))
    c5 = relu(conv(d4, w5, b5))
    return relu(jnp.concatenate([c1, c2, c3, c4, c5], axis=1))


if __name__ == "__main__":
    B, C_in, N = 2, 16, 16                    # small shapes; 5 convs of 32 -> 160 ch

    key = jax.random.PRNGKey(0)
    ks = jax.random.split(key, 10)

    x = jax.random.normal(ks[0], (B, C_in, N), dtype=jnp.float32)

    # BatchNorm1d parameters / running stats (inference mode).
    gamma = jax.random.uniform(ks[1], (C_in,), jnp.float32, 0.5, 1.5)
    beta = 0.1 * jax.random.normal(ks[2], (C_in,), jnp.float32)
    run_mean = 0.1 * jax.random.normal(ks[3], (C_in,), jnp.float32)
    run_var = jax.random.uniform(ks[4], (C_in,), jnp.float32, 0.5, 1.5)

    # Conv1d weights/biases, PyTorch layout (C_out, C_in, K), default-style init.
    def make_conv(k, c_in, c_out=32, ksz=3):
        kw, kb = jax.random.split(k)
        bound = 1.0 / (c_in * ksz) ** 0.5
        w = jax.random.uniform(kw, (c_out, c_in, ksz), jnp.float32, -bound, bound)
        b = jax.random.uniform(kb, (c_out,), jnp.float32, -bound, bound)
        return w, b

    # Dense-block in-channels: C_in, 32, 64, 96, 128 (matches the PyTorch module).
    convs = [make_conv(ks[5], C_in), make_conv(ks[6], 32), make_conv(ks[7], 64),
             make_conv(ks[8], 96), make_conv(ks[9], 128)]

    out = jax.block_until_ready(
        dense_block1d(x, gamma, beta, run_mean, run_var, convs))
    ref = jax.block_until_ready(
        _ref_forward(x, gamma, beta, run_mean, run_var, convs))

    assert out.shape == (B, 160, N), out.shape
    max_err = jnp.max(jnp.abs(out - ref))
    assert jnp.allclose(out, ref, rtol=2e-2, atol=2e-2), f"max abs err {max_err}"

    print("KERNEL_OK")
</pallas_src>

<mosaic_0001>
module attributes {stable_mosaic.version = 11 : i64} {
  func.func @_dense_block_kernel(%arg0: i32, %arg1: memref<2x16x16xf32, #tpu.memory_space<vmem>>, %arg2: memref<16x1xf32, #tpu.memory_space<vmem>>, %arg3: memref<16x1xf32, #tpu.memory_space<vmem>>, %arg4: memref<96x16xf32, #tpu.memory_space<vmem>>, %arg5: memref<32x1xf32, #tpu.memory_space<vmem>>, %arg6: memref<96x32xf32, #tpu.memory_space<vmem>>, %arg7: memref<32x1xf32, #tpu.memory_space<vmem>>, %arg8: memref<96x64xf32, #tpu.memory_space<vmem>>, %arg9: memref<32x1xf32, #tpu.memory_space<vmem>>, %arg10: memref<96x96xf32, #tpu.memory_space<vmem>>, %arg11: memref<32x1xf32, #tpu.memory_space<vmem>>, %arg12: memref<96x128xf32, #tpu.memory_space<vmem>>, %arg13: memref<32x1xf32, #tpu.memory_space<vmem>>, %arg14: memref<2x160x16xf32, #tpu.memory_space<vmem>>, %arg15: memref<16x36xf32, #tpu.memory_space<vmem>>, %arg16: memref<128x36xf32, #tpu.memory_space<vmem>>) attributes {dimension_semantics = [#tpu.dimension_semantics<parallel>], iteration_bounds = array<i64: 1>, scalar_prefetch = 0 : i64, scratch_operands = 2 : i64, tpu.core_type = #tpu.core_type<tc>, window_params = [{transform_indices = @transform_0, window_bounds = array<i64: 2, 16, 16>}, {pipeline_mode = #tpu.pipeline_mode<synchronous>, transform_indices = @transform_1, window_bounds = array<i64: 16, 1>}, {pipeline_mode = #tpu.pipeline_mode<synchronous>, transform_indices = @transform_2, window_bounds = array<i64: 16, 1>}, {pipeline_mode = #tpu.pipeline_mode<synchronous>, transform_indices = @transform_3, window_bounds = array<i64: 96, 16>}, {pipeline_mode = #tpu.pipeline_mode<synchronous>, transform_indices = @transform_4, window_bounds = array<i64: 32, 1>}, {pipeline_mode = #tpu.pipeline_mode<synchronous>, transform_indices = @transform_5, window_bounds = array<i64: 96, 32>}, {pipeline_mode = #tpu.pipeline_mode<synchronous>, transform_indices = @transform_6, window_bounds = array<i64: 32, 1>}, {pipeline_mode = #tpu.pipeline_mode<synchronous>, transform_indices = @transform_7, window_bounds = array<i64: 96, 64>}, {pipeline_mode = #tpu.pipeline_mode<synchronous>, transform_indices = @transform_8, window_bounds = array<i64: 32, 1>}, {pipeline_mode = #tpu.pipeline_mode<synchronous>, transform_indices = @transform_9, window_bounds = array<i64: 96, 96>}, {pipeline_mode = #tpu.pipeline_mode<synchronous>, transform_indices = @transform_10, window_bounds = array<i64: 32, 1>}, {pipeline_mode = #tpu.pipeline_mode<synchronous>, transform_indices = @transform_11, window_bounds = array<i64: 96, 128>}, {pipeline_mode = #tpu.pipeline_mode<synchronous>, transform_indices = @transform_12, window_bounds = array<i64: 32, 1>}, {transform_indices = @transform_13, window_bounds = array<i64: 2, 160, 16>}]} {
    %cst = arith.constant 0.000000e+00 : f32
    %0 = vector.broadcast %cst : f32 to vector<16x1xf32>
    %c0 = arith.constant 0 : index
    %c0_0 = arith.constant 0 : index
    %1 = vector.load %arg15[%c0, %c0_0] : memref<16x36xf32, #tpu.memory_space<vmem>>, vector<16x1xf32>
    tpu.vector_store %arg15[%c0, %c0_0], %0 {strides = array<i32>} : memref<16x36xf32, #tpu.memory_space<vmem>>, vector<16x1xf32>,
    %cst_1 = arith.constant 0.000000e+00 : f32
    %2 = vector.broadcast %cst_1 : f32 to vector<128x1xf32>
    %c0_2 = arith.constant 0 : index
    %c0_3 = arith.constant 0 : index
    %3 = vector.load %arg16[%c0_2, %c0_3] : memref<128x36xf32, #tpu.memory_space<vmem>>, vector<128x1xf32>
    tpu.vector_store %arg16[%c0_2, %c0_3], %2 {strides = array<i32>} : memref<128x36xf32, #tpu.memory_space<vmem>>, vector<128x1xf32>,
    %cst_4 = arith.constant 0.000000e+00 : f32
    %4 = vector.broadcast %cst_4 : f32 to vector<16x1xf32>
    %c0_5 = arith.constant 0 : index
    %c17 = arith.constant 17 : index
    %5 = vector.load %arg15[%c0_5, %c17] : memref<16x36xf32, #tpu.memory_space<vmem>>, vector<16x1xf32>
    tpu.vector_store %arg15[%c0_5, %c17], %4 {strides = array<i32>} : memref<16x36xf32, #tpu.memory_space<vmem>>, vector<16x1xf32>,
    %cst_6 = arith.constant 0.000000e+00 : f32
    %6 = vector.broadcast %cst_6 : f32 to vector<128x1xf32>
    %c0_7 = arith.constant 0 : index
    %c17_8 = arith.constant 17 : index
    %7 = vector.load %arg16[%c0_7, %c17_8] : memref<128x36xf32, #tpu.memory_space<vmem>>, vector<128x1xf32>
    tpu.vector_store %arg16[%c0_7, %c17_8], %6 {strides = array<i32>} : memref<128x36xf32, #tpu.memory_space<vmem>>, vector<128x1xf32>,
    %cst_9 = arith.constant 0.000000e+00 : f32
    %8 = vector.broadcast %cst_9 : f32 to vector<16x1xf32>
    %c0_10 = arith.constant 0 : index
    %c18 = arith.constant 18 : index
    %9 = vector.load %arg15[%c0_10, %c18] : memref<16x36xf32, #tpu.memory_space<vmem>>, vector<16x1xf32>
    tpu.vector_store %arg15[%c0_10, %c18], %8 {strides = array<i32>} : memref<16x36xf32, #tpu.memory_space<vmem>>, vector<16x1xf32>,
    %cst_11 = arith.constant 0.000000e+00 : f32
    %10 = vector.broadcast %cst_11 : f32 to vector<128x1xf32>
    %c0_12 = arith.constant 0 : index
    %c18_13 = arith.constant 18 : index
    %11 = vector.load %arg16[%c0_12, %c18_13] : memref<128x36xf32, #tpu.memory_space<vmem>>, vector<128x1xf32>
    tpu.vector_store %arg16[%c0_12, %c18_13], %10 {strides = array<i32>} : memref<128x36xf32, #tpu.memory_space<vmem>>, vector<128x1xf32>,
    %cst_14 = arith.constant 0.000000e+00 : f32
    %12 = vector.broadcast %cst_14 : f32 to vector<16x1xf32>
    %c0_15 = arith.constant 0 : index
    %c35 = arith.constant 35 : index
    %13 = vector.load %arg15[%c0_15, %c35] : memref<16x36xf32, #tpu.memory_space<vmem>>, vector<16x1xf32>
    tpu.vector_store %arg15[%c0_15, %c35], %12 {strides = array<i32>} : memref<16x36xf32, #tpu.memory_space<vmem>>, vector<16x1xf32>,
    %cst_16 = arith.constant 0.000000e+00 : f32
    %14 = vector.broadcast %cst_16 : f32 to vector<128x1xf32>
    %c0_17 = arith.constant 0 : index
    %c35_18 = arith.constant 35 : index
    %15 = vector.load %arg16[%c0_17, %c35_18] : memref<128x36xf32, #tpu.memory_space<vmem>>, vector<128x1xf32>
    tpu.vector_store %arg16[%c0_17, %c35_18], %14 {strides = array<i32>} : memref<128x36xf32, #tpu.memory_space<vmem>>, vector<128x1xf32>,
    %c0_19 = arith.constant 0 : index
    %c0_20 = arith.constant 0 : index
    %16 = vector.load %arg2[%c0_19, %c0_20] : memref<16x1xf32, #tpu.memory_space<vmem>>, vector<16x1xf32>
    %c0_21 = arith.constant 0 : index
    %c0_22 = arith.constant 0 : index
    %17 = vector.load %arg3[%c0_21, %c0_22] : memref<16x1xf32, #tpu.memory_space<vmem>>, vector<16x1xf32>
    %c0_23 = arith.constant 0 : index
    %c0_24 = arith.constant 0 : index
    %c0_25 = arith.constant 0 : index
    %18 = vector.load %arg1[%c0_23, %c0_24, %c0_25] : memref<2x16x16xf32, #tpu.memory_space<vmem>>, vector<1x16x16xf32>
    %19 = vector.shape_cast %18 : vector<1x16x16xf32> to vector<16x16xf32>
    %20 = vector.broadcast %16 : vector<16x1xf32> to vector<16x16xf32>
    %21 = arith.mulf %19, %20 : vector<16x16xf32>
    %22 = vector.broadcast %17 : vector<16x1xf32> to vector<16x16xf32>
    %23 = arith.addf %21, %22 : vector<16x16xf32>
    %c0_26 = arith.constant 0 : index
    %c1 = arith.constant 1 : index
    %24 = vector.load %arg15[%c0_26, %c1] : memref<16x36xf32, #tpu.memory_space<vmem>>, vector<16x16xf32>
    tpu.vector_store %arg15[%c0_26, %c1], %23 {strides = array<i32>} : memref<16x36xf32, #tpu.memory_space<vmem>>, vector<16x16xf32>,
    %c1_27 = arith.constant 1 : index
    %c0_28 = arith.constant 0 : index
    %c0_29 = arith.constant 0 : index
    %25 = vector.load %arg1[%c1_27, %c0_28, %c0_29] : memref<2x16x16xf32, #tpu.memory_space<vmem>>, vector<1x16x16xf32>
    %26 = vector.shape_cast %25 : vector<1x16x16xf32> to vector<16x16xf32>
    %27 = vector.broadcast %16 : vector<16x1xf32> to vector<16x16xf32>
    %28 = arith.mulf %26, %27 : vector<16x16xf32>
    %29 = vector.broadcast %17 : vector<16x1xf32> to vector<16x16xf32>
    %30 = arith.addf %28, %29 : vector<16x16xf32>
    %c0_30 = arith.constant 0 : index
    %c19 = arith.constant 19 : index
    %31 = vector.load %arg15[%c0_30, %c19] : memref<16x36xf32, #tpu.memory_space<vmem>>, vector<16x16xf32>
    tpu.vector_store %arg15[%c0_30, %c19], %30 {strides = array<i32>} : memref<16x36xf32, #tpu.memory_space<vmem>>, vector<16x16xf32>,
    %c0_31 = arith.constant 0 : index
    %c0_32 = arith.constant 0 : index
    %32 = vector.load %arg15[%c0_31, %c0_32] : memref<16x36xf32, #tpu.memory_space<vmem>>, vector<16x36xf32>
    %c0_33 = arith.constant 0 : index
    %c0_34 = arith.constant 0 : index
    %33 = vector.load %arg4[%c0_33, %c0_34] : memref<96x16xf32, #tpu.memory_space<vmem>>, vector<96x16xf32>
    %cst_35 = arith.constant dense<0.000000e+00> : vector<96x36xf32>
    %34 = tpu.matmul %33, %32, %cst_35 {dimension_numbers = #tpu.dot_dimension_numbers<[1], [0], [0], [1], [0, 0, 1, 1], [], []>} : vector<96x16xf32>, vector<16x36xf32>, vector<96x36xf32> -> vector<96x36xf32>
    %c0_36 = arith.constant 0 : index
    %c0_37 = arith.constant 0 : index
    %35 = vector.load %arg5[%c0_36, %c0_37] : memref<32x1xf32, #tpu.memory_space<vmem>>, vector<32x1xf32>
    %36 = vector.extract_strided_slice %34 {offsets = [0, 0], sizes = [32, 16], strides = [1, 1]} : vector<96x36xf32> to vector<32x16xf32>
    %37 = vector.extract_strided_slice %34 {offsets = [32, 1], sizes = [32, 16], strides = [1, 1]} : vector<96x36xf32> to vector<32x16xf32>
    %38 = arith.addf %36, %37 : vector<32x16xf32>
    %39 = vector.extract_strided_slice %34 {offsets = [64, 2], sizes = [32, 16], strides = [1, 1]} : vector<96x36xf32> to vector<32x16xf32>
    %40 = arith.addf %38, %39 : vector<32x16xf32>
    %41 = vector.broadcast %35 : vector<32x1xf32> to vector<32x16xf32>
    %42 = arith.addf %40, %41 : vector<32x16xf32>
    %cst_38 = arith.constant 0.000000e+00 : f32
    %43 = vector.broadcast %cst_38 : f32 to vector<32x16xf32>
    %44 = arith.maximumf %42, %43 : vector<32x16xf32>
    %c0_39 = arith.constant 0 : index
    %c0_40 = arith.constant 0 : index
    %c0_41 = arith.constant 0 : index
    %45 = vector.load %arg14[%c0_39, %c0_40, %c0_41] : memref<2x160x16xf32, #tpu.memory_space<vmem>>, vector<1x32x16xf32>
    %46 = vector.shape_cast %45 : vector<1x32x16xf32> to vector<32x16xf32>
    %47 = vector.shape_cast %44 : vector<32x16xf32> to vector<1x32x16xf32>
    tpu.vector_store %arg14[%c0_39, %c0_40, %c0_41], %47 {strides = array<i32>} : memref<2x160x16xf32, #tpu.memory_space<vmem>>, vector<1x32x16xf32>,
    %c0_42 = arith.constant 0 : index
    %c1_43 = arith.constant 1 : index
    %48 = vector.load %arg16[%c0_42, %c1_43] : memref<128x36xf32, #tpu.memory_space<vmem>>, vector<32x16xf32>
    tpu.vector_store %arg16[%c0_42, %c1_43], %44 {strides = array<i32>} : memref<128x36xf32, #tpu.memory_space<vmem>>, vector<32x16xf32>,
    %49 = vector.extract_strided_slice %34 {offsets = [0, 18], sizes = [32, 16], strides = [1, 1]} : vector<96x36xf32> to vector<32x16xf32>
    %50 = vector.extract_strided_slice %34 {offsets = [32, 19], sizes = [32, 16], strides = [1, 1]} : vector<96x36xf32> to vector<32x16xf32>
    %51 = arith.addf %49, %50 : vector<32x16xf32>
    %52 = vector.extract_strided_slice %34 {offsets = [64, 20], sizes = [32, 16], strides = [1, 1]} : vector<96x36xf32> to vector<32x16xf32>
    %53 = arith.addf %51, %52 : vector<32x16xf32>
    %54 = vector.broadcast %35 : vector<32x1xf32> to vector<32x16xf32>
    %55 = arith.addf %53, %54 : vector<32x16xf32>
    %cst_44 = arith.constant 0.000000e+00 : f32
    %56 = vector.broadcast %cst_44 : f32 to vector<32x16xf32>
    %57 = arith.maximumf %55, %56 : vector<32x16xf32>
    %c1_45 = arith.constant 1 : index
    %c0_46 = arith.constant 0 : index
    %c0_47 = arith.constant 0 : index
    %58 = vector.load %arg14[%c1_45, %c0_46, %c0_47] : memref<2x160x16xf32, #tpu.memory_space<vmem>>, vector<1x32x16xf32>
    %59 = vector.shape_cast %58 : vector<1x32x16xf32> to vector<32x16xf32>
    %60 = vector.shape_cast %57 : vector<32x16xf32> to vector<1x32x16xf32>
    tpu.vector_store %arg14[%c1_45, %c0_46, %c0_47], %60 {strides = array<i32>} : memref<2x160x16xf32, #tpu.memory_space<vmem>>, vector<1x32x16xf32>,
    %c0_48 = arith.constant 0 : index
    %c19_49 = arith.constant 19 : index
    %61 = vector.load %arg16[%c0_48, %c19_49] : memref<128x36xf32, #tpu.memory_space<vmem>>, vector<32x16xf32>
    tpu.vector_store %arg16[%c0_48, %c19_49], %57 {strides = array<i32>} : memref<128x36xf32, #tpu.memory_space<vmem>>, vector<32x16xf32>,
    %c0_50 = arith.constant 0 : index
    %c0_51 = arith.constant 0 : index
    %62 = vector.load %arg16[%c0_50, %c0_51] : memref<128x36xf32, #tpu.memory_space<vmem>>, vector<32x36xf32>
    %c0_52 = arith.constant 0 : index
    %c0_53 = arith.constant 0 : index
    %63 = vector.load %arg6[%c0_52, %c0_53] : memref<96x32xf32, #tpu.memory_space<vmem>>, vector<96x32xf32>
    %cst_54 = arith.constant dense<0.000000e+00> : vector<96x36xf32>
    %64 = tpu.matmul %63, %62, %cst_54 {dimension_numbers = #tpu.dot_dimension_numbers<[1], [0], [0], [1], [0, 0, 1, 1], [], []>} : vector<96x32xf32>, vector<32x36xf32>, vector<96x36xf32> -> vector<96x36xf32>
    %c0_55 = arith.constant 0 : index
    %c0_56 = arith.constant 0 : index
    %65 = vector.load %arg7[%c0_55, %c0_56] : memref<32x1xf32, #tpu.memory_space<vmem>>, vector<32x1xf32>
    %66 = vector.extract_strided_slice %64 {offsets = [0, 0], sizes = [32, 16], strides = [1, 1]} : vector<96x36xf32> to vector<32x16xf32>
    %67 = vector.extract_strided_slice %64 {offsets = [32, 1], sizes = [32, 16], strides = [1, 1]} : vector<96x36xf32> to vector<32x16xf32>
    %68 = arith.addf %66, %67 : vector<32x16xf32>
    %69 = vector.extract_strided_slice %64 {offsets = [64, 2], sizes = [32, 16], strides = [1, 1]} : vector<96x36xf32> to vector<32x16xf32>
    %70 = arith.addf %68, %69 : vector<32x16xf32>
    %71 = vector.broadcast %65 : vector<32x1xf32> to vector<32x16xf32>
    %72 = arith.addf %70, %71 : vector<32x16xf32>
    %cst_57 = arith.constant 0.000000e+00 : f32
    %73 = vector.broadcast %cst_57 : f32 to vector<32x16xf32>
    %74 = arith.maximumf %72, %73 : vector<32x16xf32>
    %c0_58 = arith.constant 0 : index
    %c32 = arith.constant 32 : index
    %c0_59 = arith.constant 0 : index
    %75 = vector.load %arg14[%c0_58, %c32, %c0_59] : memref<2x160x16xf32, #tpu.memory_space<vmem>>, vector<1x32x16xf32>
    %76 = vector.shape_cast %75 : vector<1x32x16xf32> to vector<32x16xf32>
    %77 = vector.shape_cast %74 : vector<32x16xf32> to vector<1x32x16xf32>
    tpu.vector_store %arg14[%c0_58, %c32, %c0_59], %77 {strides = array<i32>} : memref<2x160x16xf32, #tpu.memory_space<vmem>>, vector<1x32x16xf32>,
    %c32_60 = arith.constant 32 : index
    %c1_61 = arith.constant 1 : index
    %78 = vector.load %arg16[%c32_60, %c1_61] : memref<128x36xf32, #tpu.memory_space<vmem>>, vector<32x16xf32>
    tpu.vector_store %arg16[%c32_60, %c1_61], %74 {strides = array<i32>} : memref<128x36xf32, #tpu.memory_space<vmem>>, vector<32x16xf32>,
    %79 = vector.extract_strided_slice %64 {offsets = [0, 18], sizes = [32, 16], strides = [1, 1]} : vector<96x36xf32> to vector<32x16xf32>
    %80 = vector.extract_strided_slice %64 {offsets = [32, 19], sizes = [32, 16], strides = [1, 1]} : vector<96x36xf32> to vector<32x16xf32>
    %81 = arith.addf %79, %80 : vector<32x16xf32>
    %82 = vector.extract_strided_slice %64 {offsets = [64, 20], sizes = [32, 16], strides = [1, 1]} : vector<96x36xf32> to vector<32x16xf32>
    %83 = arith.addf %81, %82 : vector<32x16xf32>
    %84 = vector.broadcast %65 : vector<32x1xf32> to vector<32x16xf32>
    %85 = arith.addf %83, %84 : vector<32x16xf32>
    %cst_62 = arith.constant 0.000000e+00 : f32
    %86 = vector.broadcast %cst_62 : f32 to vector<32x16xf32>
    %87 = arith.maximumf %85, %86 : vector<32x16xf32>
    %c1_63 = arith.constant 1 : index
    %c32_64 = arith.constant 32 : index
    %c0_65 = arith.constant 0 : index
    %88 = vector.load %arg14[%c1_63, %c32_64, %c0_65] : memref<2x160x16xf32, #tpu.memory_space<vmem>>, vector<1x32x16xf32>
    %89 = vector.shape_cast %88 : vector<1x32x16xf32> to vector<32x16xf32>
    %90 = vector.shape_cast %87 : vector<32x16xf32> to vector<1x32x16xf32>
    tpu.vector_store %arg14[%c1_63, %c32_64, %c0_65], %90 {strides = array<i32>} : memref<2x160x16xf32, #tpu.memory_space<vmem>>, vector<1x32x16xf32>,
    %c32_66 = arith.constant 32 : index
    %c19_67 = arith.constant 19 : index
    %91 = vector.load %arg16[%c32_66, %c19_67] : memref<128x36xf32, #tpu.memory_space<vmem>>, vector<32x16xf32>
    tpu.vector_store %arg16[%c32_66, %c19_67], %87 {strides = array<i32>} : memref<128x36xf32, #tpu.memory_space<vmem>>, vector<32x16xf32>,
    %c0_68 = arith.constant 0 : index
    %c0_69 = arith.constant 0 : index
    %92 = vector.load %arg16[%c0_68, %c0_69] : memref<128x36xf32, #tpu.memory_space<vmem>>, vector<64x36xf32>
    %c0_70 = arith.constant 0 : index
    %c0_71 = arith.constant 0 : index
    %93 = vector.load %arg8[%c0_70, %c0_71] : memref<96x64xf32, #tpu.memory_space<vmem>>, vector<96x64xf32>
    %cst_72 = arith.constant dense<0.000000e+00> : vector<96x36xf32>
    %94 = tpu.matmul %93, %92, %cst_72 {dimension_numbers = #tpu.dot_dimension_numbers<[1], [0], [0], [1], [0, 0, 1, 1], [], []>} : vector<96x64xf32>, vector<64x36xf32>, vector<96x36xf32> -> vector<96x36xf32>
    %c0_73 = arith.constant 0 : index
    %c0_74 = arith.constant 0 : index
    %95 = vector.load %arg9[%c0_73, %c0_74] : memref<32x1xf32, #tpu.memory_space<vmem>>, vector<32x1xf32>
    %96 = vector.extract_strided_slice %94 {offsets = [0, 0], sizes = [32, 16], strides = [1, 1]} : vector<96x36xf32> to vector<32x16xf32>
    %97 = vector.extract_strided_slice %94 {offsets = [32, 1], sizes = [32, 16], strides = [1, 1]} : vector<96x36xf32> to vector<32x16xf32>
    %98 = arith.addf %96, %97 : vector<32x16xf32>
    %99 = vector.extract_strided_slice %94 {offsets = [64, 2], sizes = [32, 16], strides = [1, 1]} : vector<96x36xf32> to vector<32x16xf32>
    %100 = arith.addf %98, %99 : vector<32x16xf32>
    %101 = vector.broadcast %95 : vector<32x1xf32> to vector<32x16xf32>
    %102 = arith.addf %100, %101 : vector<32x16xf32>
    %cst_75 = arith.constant 0.000000e+00 : f32
    %103 = vector.broadcast %cst_75 : f32 to vector<32x16xf32>
    %104 = arith.maximumf %102, %103 : vector<32x16xf32>
    %c0_76 = arith.constant 0 : index
    %c64 = arith.constant 64 : index
    %c0_77 = arith.constant 0 : index
    %105 = vector.load %arg14[%c0_76, %c64, %c0_77] : memref<2x160x16xf32, #tpu.memory_space<vmem>>, vector<1x32x16xf32>
    %106 = vector.shape_cast %105 : vector<1x32x16xf32> to vector<32x16xf32>
    %107 = vector.shape_cast %104 : vector<32x16xf32> to vector<1x32x16xf32>
    tpu.vector_store %arg14[%c0_76, %c64, %c0_77], %107 {strides = array<i32>} : memref<2x160x16xf32, #tpu.memory_space<vmem>>, vector<1x32x16xf32>,
    %c64_78 = arith.constant 64 : index
    %c1_79 = arith.constant 1 : index
    %108 = vector.load %arg16[%c64_78, %c1_79] : memref<128x36xf32, #tpu.memory_space<vmem>>, vector<32x16xf32>
    tpu.vector_store %arg16[%c64_78, %c1_79], %104 {strides = array<i32>} : memref<128x36xf32, #tpu.memory_space<vmem>>, vector<32x16xf32>,
    %109 = vector.extract_strided_slice %94 {offsets = [0, 18], sizes = [32, 16], strides = [1, 1]} : vector<96x36xf32> to vector<32x16xf32>
    %110 = vector.extract_strided_slice %94 {offsets = [32, 19], sizes = [32, 16], strides = [1, 1]} : vector<96x36xf32> to vector<32x16xf32>
    %111 = arith.addf %109, %110 : vector<32x16xf32>
    %112 = vector.extract_strided_slice %94 {offsets = [64, 20], sizes = [32, 16], strides = [1, 1]} : vector<96x36xf32> to vector<32x16xf32>
    %113 = arith.addf %111, %112 : vector<32x16xf32>
    %114 = vector.broadcast %95 : vector<32x1xf32> to vector<32x16xf32>
    %115 = arith.addf %113, %114 : vector<32x16xf32>
    %cst_80 = arith.constant 0.000000e+00 : f32
    %116 = vector.broadcast %cst_80 : f32 to vector<32x16xf32>
    %117 = arith.maximumf %115, %116 : vector<32x16xf32>
    %c1_81 = arith.constant 1 : index
    %c64_82 = arith.constant 64 : index
    %c0_83 = arith.constant 0 : index
    %118 = vector.load %arg14[%c1_81, %c64_82, %c0_83] : memref<2x160x16xf32, #tpu.memory_space<vmem>>, vector<1x32x16xf32>
    %119 = vector.shape_cast %118 : vector<1x32x16xf32> to vector<32x16xf32>
    %120 = vector.shape_cast %117 : vector<32x16xf32> to vector<1x32x16xf32>
    tpu.vector_store %arg14[%c1_81, %c64_82, %c0_83], %120 {strides = array<i32>} : memref<2x160x16xf32, #tpu.memory_space<vmem>>, vector<1x32x16xf32>,
    %c64_84 = arith.constant 64 : index
    %c19_85 = arith.constant 19 : index
    %121 = vector.load %arg16[%c64_84, %c19_85] : memref<128x36xf32, #tpu.memory_space<vmem>>, vector<32x16xf32>
    tpu.vector_store %arg16[%c64_84, %c19_85], %117 {strides = array<i32>} : memref<128x36xf32, #tpu.memory_space<vmem>>, vector<32x16xf32>,
    %c0_86 = arith.constant 0 : index
    %c0_87 = arith.constant 0 : index
    %122 = vector.load %arg16[%c0_86, %c0_87] : memref<128x36xf32, #tpu.memory_space<vmem>>, vector<96x36xf32>
    %c0_88 = arith.constant 0 : index
    %c0_89 = arith.constant 0 : index
    %123 = vector.load %arg10[%c0_88, %c0_89] : memref<96x96xf32, #tpu.memory_space<vmem>>, vector<96x96xf32>
    %cst_90 = arith.constant dense<0.000000e+00> : vector<96x36xf32>
    %124 = tpu.matmul %123, %122, %cst_90 {dimension_numbers = #tpu.dot_dimension_numbers<[1], [0], [0], [1], [0, 0, 1, 1], [], []>} : vector<96x96xf32>, vector<96x36xf32>, vector<96x36xf32> -> vector<96x36xf32>
    %c0_91 = arith.constant 0 : index
    %c0_92 = arith.constant 0 : index
    %125 = vector.load %arg11[%c0_91, %c0_92] : memref<32x1xf32, #tpu.memory_space<vmem>>, vector<32x1xf32>
    %126 = vector.extract_strided_slice %124 {offsets = [0, 0], sizes = [32, 16], strides = [1, 1]} : vector<96x36xf32> to vector<32x16xf32>
    %127 = vector.extract_strided_slice %124 {offsets = [32, 1], sizes = [32, 16], strides = [1, 1]} : vector<96x36xf32> to vector<32x16xf32>
    %128 = arith.addf %126, %127 : vector<32x16xf32>
    %129 = vector.extract_strided_slice %124 {offsets = [64, 2], sizes = [32, 16], strides = [1, 1]} : vector<96x36xf32> to vector<32x16xf32>
    %130 = arith.addf %128, %129 : vector<32x16xf32>
    %131 = vector.broadcast %125 : vector<32x1xf32> to vector<32x16xf32>
    %132 = arith.addf %130, %131 : vector<32x16xf32>
    %cst_93 = arith.constant 0.000000e+00 : f32
    %133 = vector.broadcast %cst_93 : f32 to vector<32x16xf32>
    %134 = arith.maximumf %132, %133 : vector<32x16xf32>
    %c0_94 = arith.constant 0 : index
    %c96 = arith.constant 96 : index
    %c0_95 = arith.constant 0 : index
    %135 = vector.load %arg14[%c0_94, %c96, %c0_95] : memref<2x160x16xf32, #tpu.memory_space<vmem>>, vector<1x32x16xf32>
    %136 = vector.shape_cast %135 : vector<1x32x16xf32> to vector<32x16xf32>
    %137 = vector.shape_cast %134 : vector<32x16xf32> to vector<1x32x16xf32>
    tpu.vector_store %arg14[%c0_94, %c96, %c0_95], %137 {strides = array<i32>} : memref<2x160x16xf32, #tpu.memory_space<vmem>>, vector<1x32x16xf32>,
    %c96_96 = arith.constant 96 : index
    %c1_97 = arith.constant 1 : index
    %138 = vector.load %arg16[%c96_96, %c1_97] : memref<128x36xf32, #tpu.memory_space<vmem>>, vector<32x16xf32>
    tpu.vector_store %arg16[%c96_96, %c1_97], %134 {strides = array<i32>} : memref<128x36xf32, #tpu.memory_space<vmem>>, vector<32x16xf32>,
    %139 = vector.extract_strided_slice %124 {offsets = [0, 18], sizes = [32, 16], strides = [1, 1]} : vector<96x36xf32> to vector<32x16xf32>
    %140 = vector.extract_strided_slice %124 {offsets = [32, 19], sizes = [32, 16], strides = [1, 1]} : vector<96x36xf32> to vector<32x16xf32>
    %141 = arith.addf %139, %140 : vector<32x16xf32>
    %142 = vector.extract_strided_slice %124 {offsets = [64, 20], sizes = [32, 16], strides = [1, 1]} : vector<96x36xf32> to vector<32x16xf32>
    %143 = arith.addf %141, %142 : vector<32x16xf32>
    %144 = vector.broadcast %125 : vector<32x1xf32> to vector<32x16xf32>
    %145 = arith.addf %143, %144 : vector<32x16xf32>
    %cst_98 = arith.constant 0.000000e+00 : f32
    %146 = vector.broadcast %cst_98 : f32 to vector<32x16xf32>
    %147 = arith.maximumf %145, %146 : vector<32x16xf32>
    %c1_99 = arith.constant 1 : index
    %c96_100 = arith.constant 96 : index
    %c0_101 = arith.constant 0 : index
    %148 = vector.load %arg14[%c1_99, %c96_100, %c0_101] : memref<2x160x16xf32, #tpu.memory_space<vmem>>, vector<1x32x16xf32>
    %149 = vector.shape_cast %148 : vector<1x32x16xf32> to vector<32x16xf32>
    %150 = vector.shape_cast %147 : vector<32x16xf32> to vector<1x32x16xf32>
    tpu.vector_store %arg14[%c1_99, %c96_100, %c0_101], %150 {strides = array<i32>} : memref<2x160x16xf32, #tpu.memory_space<vmem>>, vector<1x32x16xf32>,
    %c96_102 = arith.constant 96 : index
    %c19_103 = arith.constant 19 : index
    %151 = vector.load %arg16[%c96_102, %c19_103] : memref<128x36xf32, #tpu.memory_space<vmem>>, vector<32x16xf32>
    tpu.vector_store %arg16[%c96_102, %c19_103], %147 {strides = array<i32>} : memref<128x36xf32, #tpu.memory_space<vmem>>, vector<32x16xf32>,
    %c0_104 = arith.constant 0 : index
    %c0_105 = arith.constant 0 : index
    %152 = vector.load %arg16[%c0_104, %c0_105] : memref<128x36xf32, #tpu.memory_space<vmem>>, vector<128x36xf32>
    %c0_106 = arith.constant 0 : index
    %c0_107 = arith.constant 0 : index
    %153 = vector.load %arg12[%c0_106, %c0_107] : memref<96x128xf32, #tpu.memory_space<vmem>>, vector<96x128xf32>
    %cst_108 = arith.constant dense<0.000000e+00> : vector<96x36xf32>
    %154 = tpu.matmul %153, %152, %cst_108 {dimension_numbers = #tpu.dot_dimension_numbers<[1], [0], [0], [1], [0, 0, 1, 1], [], []>} : vector<96x128xf32>, vector<128x36xf32>, vector<96x36xf32> -> vector<96x36xf32>
    %c0_109 = arith.constant 0 : index
    %c0_110 = arith.constant 0 : index
    %155 = vector.load %arg13[%c0_109, %c0_110] : memref<32x1xf32, #tpu.memory_space<vmem>>, vector<32x1xf32>
    %156 = vector.extract_strided_slice %154 {offsets = [0, 0], sizes = [32, 16], strides = [1, 1]} : vector<96x36xf32> to vector<32x16xf32>
    %157 = vector.extract_strided_slice %154 {offsets = [32, 1], sizes = [32, 16], strides = [1, 1]} : vector<96x36xf32> to vector<32x16xf32>
    %158 = arith.addf %156, %157 : vector<32x16xf32>
    %159 = vector.extract_strided_slice %154 {offsets = [64, 2], sizes = [32, 16], strides = [1, 1]} : vector<96x36xf32> to vector<32x16xf32>
    %160 = arith.addf %158, %159 : vector<32x16xf32>
    %161 = vector.broadcast %155 : vector<32x1xf32> to vector<32x16xf32>
    %162 = arith.addf %160, %161 : vector<32x16xf32>
    %cst_111 = arith.constant 0.000000e+00 : f32
    %163 = vector.broadcast %cst_111 : f32 to vector<32x16xf32>
    %164 = arith.maximumf %162, %163 : vector<32x16xf32>
    %c0_112 = arith.constant 0 : index
    %c128 = arith.constant 128 : index
    %c0_113 = arith.constant 0 : index
    %165 = vector.load %arg14[%c0_112, %c128, %c0_113] : memref<2x160x16xf32, #tpu.memory_space<vmem>>, vector<1x32x16xf32>
    %166 = vector.shape_cast %165 : vector<1x32x16xf32> to vector<32x16xf32>
    %167 = vector.shape_cast %164 : vector<32x16xf32> to vector<1x32x16xf32>
    tpu.vector_store %arg14[%c0_112, %c128, %c0_113], %167 {strides = array<i32>} : memref<2x160x16xf32, #tpu.memory_space<vmem>>, vector<1x32x16xf32>,
    %168 = vector.extract_strided_slice %154 {offsets = [0, 18], sizes = [32, 16], strides = [1, 1]} : vector<96x36xf32> to vector<32x16xf32>
    %169 = vector.extract_strided_slice %154 {offsets = [32, 19], sizes = [32, 16], strides = [1, 1]} : vector<96x36xf32> to vector<32x16xf32>
    %170 = arith.addf %168, %169 : vector<32x16xf32>
    %171 = vector.extract_strided_slice %154 {offsets = [64, 20], sizes = [32, 16], strides = [1, 1]} : vector<96x36xf32> to vector<32x16xf32>
    %172 = arith.addf %170, %171 : vector<32x16xf32>
    %173 = vector.broadcast %155 : vector<32x1xf32> to vector<32x16xf32>
    %174 = arith.addf %172, %173 : vector<32x16xf32>
    %cst_114 = arith.constant 0.000000e+00 : f32
    %175 = vector.broadcast %cst_114 : f32 to vector<32x16xf32>
    %176 = arith.maximumf %174, %175 : vector<32x16xf32>
    %c1_115 = arith.constant 1 : index
    %c128_116 = arith.constant 128 : index
    %c0_117 = arith.constant 0 : index
    %177 = vector.load %arg14[%c1_115, %c128_116, %c0_117] : memref<2x160x16xf32, #tpu.memory_space<vmem>>, vector<1x32x16xf32>
    %178 = vector.shape_cast %177 : vector<1x32x16xf32> to vector<32x16xf32>
    %179 = vector.shape_cast %176 : vector<32x16xf32> to vector<1x32x16xf32>
    tpu.vector_store %arg14[%c1_115, %c128_116, %c0_117], %179 {strides = array<i32>} : memref<2x160x16xf32, #tpu.memory_space<vmem>>, vector<1x32x16xf32>,
    return
  }
  func.func @transform_0(%arg0: i32) -> (i32, i32, i32) {
    %c0_i32 = arith.constant 0 : i32
    %c0_i32_0 = arith.constant 0 : i32
    %c0_i32_1 = arith.constant 0 : i32
    return %arg0, %c0_i32, %c0_i32_0 : i32, i32, i32
  }
  func.func @transform_1(%arg0: i32) -> (i32, i32) {
    %c0_i32 = arith.constant 0 : i32
    %c0_i32_0 = arith.constant 0 : i32
    %c0_i32_1 = arith.constant 0 : i32
    return %c0_i32, %c0_i32_0 : i32, i32
  }
  func.func @transform_2(%arg0: i32) -> (i32, i32) {
    %c0_i32 = arith.constant 0 : i32
    %c0_i32_0 = arith.constant 0 : i32
    %c0_i32_1 = arith.constant 0 : i32
    return %c0_i32, %c0_i32_0 : i32, i32
  }
  func.func @transform_3(%arg0: i32) -> (i32, i32) {
    %c0_i32 = arith.constant 0 : i32
    %c0_i32_0 = arith.constant 0 : i32
    %c0_i32_1 = arith.constant 0 : i32
    return %c0_i32, %c0_i32_0 : i32, i32
  }
  func.func @transform_4(%arg0: i32) -> (i32, i32) {
    %c0_i32 = arith.constant 0 : i32
    %c0_i32_0 = arith.constant 0 : i32
    %c0_i32_1 = arith.constant 0 : i32
    return %c0_i32, %c0_i32_0 : i32, i32
  }
  func.func @transform_5(%arg0: i32) -> (i32, i32) {
    %c0_i32 = arith.constant 0 : i32
    %c0_i32_0 = arith.constant 0 : i32
    %c0_i32_1 = arith.constant 0 : i32
    return %c0_i32, %c0_i32_0 : i32, i32
  }
  func.func @transform_6(%arg0: i32) -> (i32, i32) {
    %c0_i32 = arith.constant 0 : i32
    %c0_i32_0 = arith.constant 0 : i32
    %c0_i32_1 = arith.constant 0 : i32
    return %c0_i32, %c0_i32_0 : i32, i32
  }
  func.func @transform_7(%arg0: i32) -> (i32, i32) {
    %c0_i32 = arith.constant 0 : i32
    %c0_i32_0 = arith.constant 0 : i32
    %c0_i32_1 = arith.constant 0 : i32
    return %c0_i32, %c0_i32_0 : i32, i32
  }
  func.func @transform_8(%arg0: i32) -> (i32, i32) {
    %c0_i32 = arith.constant 0 : i32
    %c0_i32_0 = arith.constant 0 : i32
    %c0_i32_1 = arith.constant 0 : i32
    return %c0_i32, %c0_i32_0 : i32, i32
  }
  func.func @transform_9(%arg0: i32) -> (i32, i32) {
    %c0_i32 = arith.constant 0 : i32
    %c0_i32_0 = arith.constant 0 : i32
    %c0_i32_1 = arith.constant 0 : i32
    return %c0_i32, %c0_i32_0 : i32, i32
  }
  func.func @transform_10(%arg0: i32) -> (i32, i32) {
    %c0_i32 = arith.constant 0 : i32
    %c0_i32_0 = arith.constant 0 : i32
    %c0_i32_1 = arith.constant 0 : i32
    return %c0_i32, %c0_i32_0 : i32, i32
  }
  func.func @transform_11(%arg0: i32) -> (i32, i32) {
    %c0_i32 = arith.constant 0 : i32
    %c0_i32_0 = arith.constant 0 : i32
    %c0_i32_1 = arith.constant 0 : i32
    return %c0_i32, %c0_i32_0 : i32, i32
  }
  func.func @transform_12(%arg0: i32) -> (i32, i32) {
    %c0_i32 = arith.constant 0 : i32
    %c0_i32_0 = arith.constant 0 : i32
    %c0_i32_1 = arith.constant 0 : i32
    return %c0_i32, %c0_i32_0 : i32, i32
  }
  func.func @transform_13(%arg0: i32) -> (i32, i32, i32) {
    %c0_i32 = arith.constant 0 : i32
    %c0_i32_0 = arith.constant 0 : i32
    %c0_i32_1 = arith.constant 0 : i32
    return %arg0, %c0_i32, %c0_i32_0 : i32, i32, i32
  }
}

</mosaic_0001>

<llo_original>
// kernel: tpu_custom_call.1
$region0: #{tpu_custom_call.1}
  #allocation0 [shape = 'u32[]', space=smem, size = 0x4, offset = 0x4, fixed_abs, tag = 'smem constant byte address 0x4 - core index']
  #allocation1 [shape = 'u32[144,128]{1,0:T(1,128)}', space=vmem, size = 0x12000, scoped, tag = 'internal scratch']
  #allocation2 [shape = 'f32[16,36]{1,0:T(8,128)}', space=vmem, size = 0x2000, scoped, tag = 'scratch operand']
  #allocation3 [shape = 'f32[128,36]{1,0:T(8,128)}', space=vmem, size = 0x10000, scoped, tag = 'scratch operand']
  %s0 = inlined_call_operand.vmem [shape: f32[2,16,16], index: 0, kind: input, shape index: {}]
  %s1 = inlined_call_operand.vmem [shape: f32[16,1], index: 1, kind: input, shape index: {}]
  %s2 = inlined_call_operand.vmem [shape: f32[16,1], index: 2, kind: input, shape index: {}]
  %s3 = inlined_call_operand.vmem [shape: f32[96,16], index: 3, kind: input, shape index: {}]
  %s4 = inlined_call_operand.vmem [shape: f32[32,1], index: 4, kind: input, shape index: {}]
  %s5 = inlined_call_operand.vmem [shape: f32[96,32], index: 5, kind: input, shape index: {}]
  %s6 = inlined_call_operand.vmem [shape: f32[32,1], index: 6, kind: input, shape index: {}]
  %s7 = inlined_call_operand.vmem [shape: f32[96,64], index: 7, kind: input, shape index: {}]
  %s8 = inlined_call_operand.vmem [shape: f32[32,1], index: 8, kind: input, shape index: {}]
  %s9 = inlined_call_operand.vmem [shape: f32[96,96], index: 9, kind: input, shape index: {}]
  %s10 = inlined_call_operand.vmem [shape: f32[32,1], index: 10, kind: input, shape index: {}]
  %s11 = inlined_call_operand.vmem [shape: f32[96,128], index: 11, kind: input, shape index: {}]
  %s12 = inlined_call_operand.vmem [shape: f32[32,1], index: 12, kind: input, shape index: {}]
  %s13 = inlined_call_operand.vmem [shape: f32[2,160,16], index: 13, kind: output, shape index: {}]
  %s14 = sld [smem:[#allocation0]]
  $region62: #{tpu_custom_call.1} parent=0
    _
  %s16 = ssub.s32 1, %s14
  %s17 = scalar_select 0, %s16, %s14
  // Predicated region
  $region2: #{tpu_custom_call.1} parent=0 // pred_check
    _
  $region3: #{tpu_custom_call.1} parent=0 // pred_check_branch
    %19 = sbr.rel (0) target = $region5
  $region4: #{tpu_custom_call.1} parent=0 // pred_region
    _
  $region5: #{tpu_custom_call.1} parent=0 // pred_fallthru
    _
  // Predicated region
  $region6: #{tpu_custom_call.1} parent=0 // pred_check
    _
  $region7: #{tpu_custom_call.1} parent=0 // pred_check_branch
    %21 = sbr.rel (0) target = $region9
  $region8: #{tpu_custom_call.1} parent=0 // pred_region
    _
  $region9: #{tpu_custom_call.1} parent=0 // pred_fallthru
    _
  // Predicated region
  $region10: #{tpu_custom_call.1} parent=0 // pred_check
    _
  $region11: #{tpu_custom_call.1} parent=0 // pred_check_branch
    %23 = sbr.rel (0) target = $region13
  $region12: #{tpu_custom_call.1} parent=0 // pred_region
    _
  $region13: #{tpu_custom_call.1} parent=0 // pred_fallthru
    _
  // Predicated region
  $region14: #{tpu_custom_call.1} parent=0 // pred_check
    _
  $region15: #{tpu_custom_call.1} parent=0 // pred_check_branch
    %25 = sbr.rel (0) target = $region17
  $region16: #{tpu_custom_call.1} parent=0 // pred_region
    _
  $region17: #{tpu_custom_call.1} parent=0 // pred_fallthru
    _
  // Predicated region
  $region18: #{tpu_custom_call.1} parent=0 // pred_check
    _
  $region19: #{tpu_custom_call.1} parent=0 // pred_check_branch
    %27 = sbr.rel (0) target = $region21
  $region20: #{tpu_custom_call.1} parent=0 // pred_region
    _
  $region21: #{tpu_custom_call.1} parent=0 // pred_fallthru
    _
  // Predicated region
  $region22: #{tpu_custom_call.1} parent=0 // pred_check
    _
  $region23: #{tpu_custom_call.1} parent=0 // pred_check_branch
    %29 = sbr.rel (0) target = $region25
  $region24: #{tpu_custom_call.1} parent=0 // pred_region
    _
  $region25: #{tpu_custom_call.1} parent=0 // pred_fallthru
    _
  // Predicated region
  $region26: #{tpu_custom_call.1} parent=0 // pred_check
    _
  $region27: #{tpu_custom_call.1} parent=0 // pred_check_branch
    %31 = sbr.rel (0) target = $region29
  $region28: #{tpu_custom_call.1} parent=0 // pred_region
    _
  $region29: #{tpu_custom_call.1} parent=0 // pred_fallthru
    _
  // Predicated region
  $region30: #{tpu_custom_call.1} parent=0 // pred_check
    _
  $region31: #{tpu_custom_call.1} parent=0 // pred_check_branch
    %33 = sbr.rel (0) target = $region33
  $region32: #{tpu_custom_call.1} parent=0 // pred_region
    _
  $region33: #{tpu_custom_call.1} parent=0 // pred_fallthru
    _
  // Predicated region
  $region34: #{tpu_custom_call.1} parent=0 // pred_check
    _
  $region35: #{tpu_custom_call.1} parent=0 // pred_check_branch
    %35 = sbr.rel (0) target = $region37
  $region36: #{tpu_custom_call.1} parent=0 // pred_region
    _
  $region37: #{tpu_custom_call.1} parent=0 // pred_fallthru
    _
  // Predicated region
  $region38: #{tpu_custom_call.1} parent=0 // pred_check
    _
  $region39: #{tpu_custom_call.1} parent=0 // pred_check_branch
    %37 = sbr.rel (0) target = $region41
  $region40: #{tpu_custom_call.1} parent=0 // pred_region
    _
  $region41: #{tpu_custom_call.1} parent=0 // pred_fallthru
    _
  // Predicated region
  $region42: #{tpu_custom_call.1} parent=0 // pred_check
    _
  $region43: #{tpu_custom_call.1} parent=0 // pred_check_branch
    %39 = sbr.rel (0) target = $region45
  $region44: #{tpu_custom_call.1} parent=0 // pred_region
    _
  $region45: #{tpu_custom_call.1} parent=0 // pred_fallthru
    _
  // Predicated region
  $region46: #{tpu_custom_call.1} parent=0 // pred_check
    _
  $region47: #{tpu_custom_call.1} parent=0 // pred_check_branch
    %41 = sbr.rel (0) target = $region49
  $region48: #{tpu_custom_call.1} parent=0 // pred_region
    _
  $region49: #{tpu_custom_call.1} parent=0 // pred_fallthru
    _
  // Predicated region
  $region50: #{tpu_custom_call.1} parent=0 // pred_check
    _
  $region51: #{tpu_custom_call.1} parent=0 // pred_check_branch
    %43 = sbr.rel (0) target = $region53
  $region52: #{tpu_custom_call.1} parent=0 // pred_region
    _
  $region53: #{tpu_custom_call.1} parent=0 // pred_fallthru
    _
  %vm44 = vcmask 7168
  %45 = vst.msk [vmem:[#allocation2] sm:$0xff] %vm44, 0.0
  %46 = vst.msk [vmem:[#allocation2 + $0x8] sm:$0xff] %vm44, 0.0
  %47 = vst.msk [vmem:[#allocation3] sm:$0xff] %vm44, 0.0
  %48 = vst.msk [vmem:[#allocation3 + $0x8] sm:$0xff] %vm44, 0.0
  %49 = vst.msk [vmem:[#allocation3 + $0x10] sm:$0xff] %vm44, 0.0
  %50 = vst.msk [vmem:[#allocation3 + $0x18] sm:$0xff] %vm44, 0.0
  %51 = vst.msk [vmem:[#allocation3 + $0x20] sm:$0xff] %vm44, 0.0
  %52 = vst.msk [vmem:[#allocation3 + $0x28] sm:$0xff] %vm44, 0.0
  %53 = vst.msk [vmem:[#allocation3 + $0x30] sm:$0xff] %vm44, 0.0
  %54 = vst.msk [vmem:[#allocation3 + $0x38] sm:$0xff] %vm44, 0.0
  %55 = vst.msk [vmem:[#allocation3 + $0x40] sm:$0xff] %vm44, 0.0
  %56 = vst.msk [vmem:[#allocation3 + $0x48] sm:$0xff] %vm44, 0.0
  %57 = vst.msk [vmem:[#allocation3 + $0x50] sm:$0xff] %vm44, 0.0
  %58 = vst.msk [vmem:[#allocation3 + $0x58] sm:$0xff] %vm44, 0.0
  %59 = vst.msk [vmem:[#allocation3 + $0x60] sm:$0xff] %vm44, 0.0
  %60 = vst.msk [vmem:[#allocation3 + $0x68] sm:$0xff] %vm44, 0.0
  %61 = vst.msk [vmem:[#allocation3 + $0x70] sm:$0xff] %vm44, 0.0
  %62 = vst.msk [vmem:[#allocation3 + $0x78] sm:$0xff] %vm44, 0.0
  %vm63 = vcmask 146568
  %64 = vst.msk [vmem:[#allocation2] sm:$0xff] %vm63, 0.0
  %65 = vst.msk [vmem:[#allocation2 + $0x8] sm:$0xff] %vm63, 0.0
  %66 = vst.msk [vmem:[#allocation3] sm:$0xff] %vm63, 0.0
  %67 = vst.msk [vmem:[#allocation3 + $0x8] sm:$0xff] %vm63, 0.0
  %68 = vst.msk [vmem:[#allocation3 + $0x10] sm:$0xff] %vm63, 0.0
  %69 = vst.msk [vmem:[#allocation3 + $0x18] sm:$0xff] %vm63, 0.0
  %70 = vst.msk [vmem:[#allocation3 + $0x20] sm:$0xff] %vm63, 0.0
  %71 = vst.msk [vmem:[#allocation3 + $0x28] sm:$0xff] %vm63, 0.0
  %72 = vst.msk [vmem:[#allocation3 + $0x30] sm:$0xff] %vm63, 0.0
  %73 = vst.msk [vmem:[#allocation3 + $0x38] sm:$0xff] %vm63, 0.0
  %74 = vst.msk [vmem:[#allocation3 + $0x40] sm:$0xff] %vm63, 0.0
  %75 = vst.msk [vmem:[#allocation3 + $0x48] sm:$0xff] %vm63, 0.0
  %76 = vst.msk [vmem:[#allocation3 + $0x50] sm:$0xff] %vm63, 0.0
  %77 = vst.msk [vmem:[#allocation3 + $0x58] sm:$0xff] %vm63, 0.0
  %78 = vst.msk [vmem:[#allocation3 + $0x60] sm:$0xff] %vm63, 0.0
  %79 = vst.msk [vmem:[#allocation3 + $0x68] sm:$0xff] %vm63, 0.0
  %80 = vst.msk [vmem:[#allocation3 + $0x70] sm:$0xff] %vm63, 0.0
  %81 = vst.msk [vmem:[#allocation3 + $0x78] sm:$0xff] %vm63, 0.0
  %vm82 = vcmask 154768
  %83 = vst.msk [vmem:[#allocation2] sm:$0xff] %vm82, 0.0
  %84 = vst.msk [vmem:[#allocation2 + $0x8] sm:$0xff] %vm82, 0.0
  %85 = vst.msk [vmem:[#allocation3] sm:$0xff] %vm82, 0.0
  %86 = vst.msk [vmem:[#allocation3 + $0x8] sm:$0xff] %vm82, 0.0
  %87 = vst.msk [vmem:[#allocation3 + $0x10] sm:$0xff] %vm82, 0.0
  %88 = vst.msk [vmem:[#allocation3 + $0x18] sm:$0xff] %vm82, 0.0
  %89 = vst.msk [vmem:[#allocation3 + $0x20] sm:$0xff] %vm82, 0.0
  %90 = vst.msk [vmem:[#allocation3 + $0x28] sm:$0xff] %vm82, 0.0
  %91 = vst.msk [vmem:[#allocation3 + $0x30] sm:$0xff] %vm82, 0.0
  %92 = vst.msk [vmem:[#allocation3 + $0x38] sm:$0xff] %vm82, 0.0
  %93 = vst.msk [vmem:[#allocation3 + $0x40] sm:$0xff] %vm82, 0.0
  %94 = vst.msk [vmem:[#allocation3 + $0x48] sm:$0xff] %vm82, 0.0
  %95 = vst.msk [vmem:[#allocation3 + $0x50] sm:$0xff] %vm82, 0.0
  %96 = vst.msk [vmem:[#allocation3 + $0x58] sm:$0xff] %vm82, 0.0
  %97 = vst.msk [vmem:[#allocation3 + $0x60] sm:$0xff] %vm82, 0.0
  %98 = vst.msk [vmem:[#allocation3 + $0x68] sm:$0xff] %vm82, 0.0
  %99 = vst.msk [vmem:[#allocation3 + $0x70] sm:$0xff] %vm82, 0.0
  %100 = vst.msk [vmem:[#allocation3 + $0x78] sm:$0xff] %vm82, 0.0
  %vm101 = vcmask 294168
  %102 = vst.msk [vmem:[#allocation2] sm:$0xff] %vm101, 0.0
  %103 = vst.msk [vmem:[#allocation2 + $0x8] sm:$0xff] %vm101, 0.0
  %104 = vst.msk [vmem:[#allocation3] sm:$0xff] %vm101, 0.0
  %105 = vst.msk [vmem:[#allocation3 + $0x8] sm:$0xff] %vm101, 0.0
  %106 = vst.msk [vmem:[#allocation3 + $0x10] sm:$0xff] %vm101, 0.0
  %107 = vst.msk [vmem:[#allocation3 + $0x18] sm:$0xff] %vm101, 0.0
  %108 = vst.msk [vmem:[#allocation3 + $0x20] sm:$0xff] %vm101, 0.0
  %109 = vst.msk [vmem:[#allocation3 + $0x28] sm:$0xff] %vm101, 0.0
  %110 = vst.msk [vmem:[#allocation3 + $0x30] sm:$0xff] %vm101, 0.0
  %111 = vst.msk [vmem:[#allocation3 + $0x38] sm:$0xff] %vm101, 0.0
  %112 = vst.msk [vmem:[#allocation3 + $0x40] sm:$0xff] %vm101, 0.0
  %113 = vst.msk [vmem:[#allocation3 + $0x48] sm:$0xff] %vm101, 0.0
  %114 = vst.msk [vmem:[#allocation3 + $0x50] sm:$0xff] %vm101, 0.0
  %115 = vst.msk [vmem:[#allocation3 + $0x58] sm:$0xff] %vm101, 0.0
  %116 = vst.msk [vmem:[#allocation3 + $0x60] sm:$0xff] %vm101, 0.0
  %117 = vst.msk [vmem:[#allocation3 + $0x68] sm:$0xff] %vm101, 0.0
  %118 = vst.msk [vmem:[#allocation3 + $0x70] sm:$0xff] %vm101, 0.0
  %119 = vst.msk [vmem:[#allocation3 + $0x78] sm:$0xff] %vm101, 0.0
  %v120 = vld [vmem:[%s1] sm:$0xff]
  %v121 = vld [vmem:[%s1 + $0x8] sm:$0xff]
  %v122 = vld [vmem:[%s2] sm:$0xff]
  %v123 = vld [vmem:[%s2 + $0x8] sm:$0xff]
  %v124 = vld [vmem:[%s0] sm:$0xff]
  %v125 = vld [vmem:[%s0 + $0x8] sm:$0xff]
  %127 = vset.pattern.permute.xlu0 0
  %128 = vperm.xlu0 %127, %v120
  %v129 = vpop.permute.xlu0 %128
  %132 = vset.pattern.permute.xlu0 0
  %133 = vperm.xlu0 %132, %v121
  %v134 = vpop.permute.xlu0 %133
  %v136 = vmul.f32 %v124, %v129
  %v137 = vmul.f32 %v125, %v134
  %139 = vset.pattern.permute.xlu0 0
  %140 = vperm.xlu0 %139, %v122
  %v141 = vpop.permute.xlu0 %140
  %144 = vset.pattern.permute.xlu0 0
  %145 = vperm.xlu0 %144, %v123
  %v146 = vpop.permute.xlu0 %145
  %v148 = vadd.f32 %v136, %v141
  %v149 = vadd.f32 %v137, %v146
  %152 = vrot.lane.b32.xlu0 %v148, 1
  %v153 = vpop.permute.xlu0 %152
  %154 = vrot.lane.b32.xlu0 %v149, 1
  %v155 = vpop.permute.xlu0 %154
  %vm158 = vcmask 138248
  %159 = vst.msk [vmem:[#allocation2] sm:$0xff] %vm158, %v153
  %160 = vst.msk [vmem:[#allocation2 + $0x8] sm:$0xff] %vm158, %v155
  %s161 = scalar_lea.vmem %s0, 16
  %v162 = vld [vmem:[%s161] sm:$0xff]
  %v163 = vld [vmem:[%s161 + $0x8] sm:$0xff]
  %v164 = vmul.f32 %v162, %v129
  %v165 = vmul.f32 %v163, %v134
  %v166 = vadd.f32 %v164, %v141
  %v167 = vadd.f32 %v165, %v146
  %170 = vrot.lane.b32.xlu0 %v166, 19
  %v171 = vpop.permute.xlu0 %170
  %172 = vrot.lane.b32.xlu0 %v167, 19
  %v173 = vpop.permute.xlu0 %172
  %vm176 = vcmask 285848
  %177 = vst.msk [vmem:[#allocation2] sm:$0xff] %vm176, %v171
  %178 = vst.msk [vmem:[#allocation2 + $0x8] sm:$0xff] %vm176, %v173
  %v179 = vld [vmem:[#allocation2] sm:$0xff]
  %v180 = vld [vmem:[#allocation2 + $0x8] sm:$0xff]
  %v181 = vld [vmem:[%s3] sm:$0xff]
  %v182 = vld [vmem:[%s3 + $0x8] sm:$0xff]
  %v183 = vld [vmem:[%s3 + $0x10] sm:$0xff]
  %v184 = vld [vmem:[%s3 + $0x18] sm:$0xff]
  %v185 = vld [vmem:[%s3 + $0x20] sm:$0xff]
  %v186 = vld [vmem:[%s3 + $0x28] sm:$0xff]
  %v187 = vld [vmem:[%s3 + $0x30] sm:$0xff]
  %v188 = vld [vmem:[%s3 + $0x38] sm:$0xff]
  %v189 = vld [vmem:[%s3 + $0x40] sm:$0xff]
  %v190 = vld [vmem:[%s3 + $0x48] sm:$0xff]
  %v191 = vld [vmem:[%s3 + $0x50] sm:$0xff]
  %v192 = vld [vmem:[%s3 + $0x58] sm:$0xff]
  %vm193 = vcmask 130048
  %v195 = vsel %vm193, %v181, 0
  %v198 = vsel %vm193, %v182, 0
  %v201 = vsel %vm193, %v183, 0
  %v204 = vsel %vm193, %v184, 0
  %v207 = vsel %vm193, %v185, 0
  %v210 = vsel %vm193, %v186, 0
  %v213 = vsel %vm193, %v187, 0
  %v216 = vsel %vm193, %v188, 0
  %v219 = vsel %vm193, %v189, 0
  %v222 = vsel %vm193, %v190, 0
  %v225 = vsel %vm193, %v191, 0
  %v228 = vsel %vm193, %v192, 0
  %230 = vmatprep.subr.mxu0 0.0
  %231 = vmatpush1.msra.mxu0 %v179
  %232 = vmatprep.subr.mxu0 0.0
  %233 = vmatpush1.msra.mxu0 %v180
  %234 = vmatprep.subr.mxu0 0.0
  %235 = vmatpush1.msra.mxu0 0.0
  %236 = vmatprep.subr.mxu0 0.0
  %237 = vmatpush1.msra.mxu0 0.0
  %238 = vmatprep.subr.mxu0 0.0
  %239 = vmatpush1.msra.mxu0 0.0
  %240 = vmatprep.subr.mxu0 0.0
  %241 = vmatpush1.msra.mxu0 0.0
  %242 = vmatprep.subr.mxu0 0.0
  %243 = vmatpush1.msra.mxu0 0.0
  %244 = vmatprep.subr.mxu0 0.0
  %245 = vmatpush1.msra.mxu0 0.0
  %246 = vmatprep.subr.mxu0 0.0
  %247 = vmatpush1.msra.mxu0 0.0
  %248 = vmatprep.subr.mxu0 0.0
  %249 = vmatpush1.msra.mxu0 0.0
  %250 = vmatprep.subr.mxu0 0.0
  %251 = vmatpush1.msra.mxu0 0.0
  %252 = vmatprep.subr.mxu0 0.0
  %253 = vmatpush1.msra.mxu0 0.0
  %254 = vmatprep.subr.mxu0 0.0
  %255 = vmatpush1.msra.mxu0 0.0
  %256 = vmatprep.subr.mxu0 0.0
  %257 = vmatpush1.msra.mxu0 0.0
  %258 = vmatprep.subr.mxu0 0.0
  %259 = vmatpush1.msra.mxu0 0.0
  %260 = vmatprep.subr.mxu0 0.0
  %261 = vmatpush1.msra.mxu0 0.0
  %262 = vmatprep.subr.mxu0 0.0
  %263 = vmatpush1.msra.mxu0 0.0
  %264 = vmatprep.subr.mxu0 0.0
  %265 = vmatpush1.msra.mxu0 0.0
  %266 = vmatprep.subr.mxu0 0.0
  %267 = vmatpush1.msra.mxu0 0.0
  %268 = vmatprep.subr.mxu0 0.0
  %269 = vmatpush1.msra.mxu0 0.0
  %270 = vmatprep.subr.mxu0 0.0
  %271 = vmatpush1.msra.mxu0 0.0
  %272 = vmatprep.subr.mxu0 0.0
  %273 = vmatpush1.msra.mxu0 0.0
  %274 = vmatprep.subr.mxu0 0.0
  %275 = vmatpush1.msra.mxu0 0.0
  %276 = vmatprep.subr.mxu0 0.0
  %277 = vmatpush1.msra.mxu0 0.0
  %278 = vmatprep.subr.mxu0 0.0
  %279 = vmatpush1.msra.mxu0 0.0
  %280 = vmatprep.subr.mxu0 0.0
  %281 = vmatpush1.msra.mxu0 0.0
  %282 = vmatprep.subr.mxu0 0.0
  %283 = vmatpush1.msra.mxu0 0.0
  %284 = vmatprep.subr.mxu0 0.0
  %285 = vmatpush1.msra.mxu0 0.0
  %286 = vmatprep.subr.mxu0 0.0
  %287 = vmatpush1.msra.mxu0 0.0
  %288 = vmatprep.subr.mxu0 0.0
  %289 = vmatpush1.msra.mxu0 0.0
  %290 = vmatprep.subr.mxu0 0.0
  %291 = vmatpush1.msra.mxu0 0.0
  %292 = vmatprep.subr.mxu0 0.0
  %293 = vmatpush1.msra.mxu0 0.0
  %294 = vmatprep.mubr.f32.mxu0 0.0
  %295 = vmatmul.mubr.f32.gmra.mrb[0].mxu0 %v195
  %v296 = vpop.f32.mrb[0].mxu0
  %v297 = vadd.f32 0.0, %v296
  %v298 = vpop.f32.mrb[0].mxu0
  %299 = vmatprep.mubr.f32.mxu0 0.0
  %300 = vmatmul.mubr.f32.gmra.mrb[0].mxu0 %v198
  %v301 = vpop.f32.mrb[0].mxu0
  %v302 = vadd.f32 0.0, %v301
  %v303 = vpop.f32.mrb[0].mxu0
  %304 = vmatprep.mubr.f32.mxu0 0.0
  %305 = vmatmul.mubr.f32.gmra.mrb[0].mxu0 %v201
  %v306 = vpop.f32.mrb[0].mxu0
  %v307 = vadd.f32 0.0, %v306
  %v308 = vpop.f32.mrb[0].mxu0
  %309 = vmatprep.mubr.f32.mxu0 0.0
  %310 = vmatmul.mubr.f32.gmra.mrb[0].mxu0 %v204
  %v311 = vpop.f32.mrb[0].mxu0
  %v312 = vadd.f32 0.0, %v311
  %v313 = vpop.f32.mrb[0].mxu0
  %314 = vmatprep.mubr.f32.mxu0 0.0
  %315 = vmatmul.mubr.f32.gmra.mrb[0].mxu0 %v207
  %v316 = vpop.f32.mrb[0].mxu0
  %v317 = vadd.f32 0.0, %v316
  %v318 = vpop.f32.mrb[0].mxu0
  %319 = vmatprep.mubr.f32.mxu0 0.0
  %320 = vmatmul.mubr.f32.gmra.mrb[0].mxu0 %v210
  %v321 = vpop.f32.mrb[0].mxu0
  %v322 = vadd.f32 0.0, %v321
  %v323 = vpop.f32.mrb[0].mxu0
  %324 = vmatprep.mubr.f32.mxu0 0.0
  %325 = vmatmul.mubr.f32.gmra.mrb[0].mxu0 %v213
  %v326 = vpop.f32.mrb[0].mxu0
  %v327 = vadd.f32 0.0, %v326
  %v328 = vpop.f32.mrb[0].mxu0
  %329 = vmatprep.mubr.f32.mxu0 0.0
  %330 = vmatmul.mubr.f32.gmra.mrb[0].mxu0 %v216
  %v331 = vpop.f32.mrb[0].mxu0
  %v332 = vadd.f32 0.0, %v331
  %v333 = vpop.f32.mrb[0].mxu0
  %334 = vmatprep.mubr.f32.mxu0 0.0
  %335 = vmatmul.mubr.f32.gmra.mrb[0].mxu0 %v219
  %v336 = vpop.f32.mrb[0].mxu0
  %v337 = vadd.f32 0.0, %v336
  %v338 = vpop.f32.mrb[0].mxu0
  %339 = vmatprep.mubr.f32.mxu0 0.0
  %340 = vmatmul.mubr.f32.gmra.mrb[0].mxu0 %v222
  %v341 = vpop.f32.mrb[0].mxu0
  %v342 = vadd.f32 0.0, %v341
  %v343 = vpop.f32.mrb[0].mxu0
  %344 = vmatprep.mubr.f32.mxu0 0.0
  %345 = vmatmul.mubr.f32.gmra.mrb[0].mxu0 %v225
  %v346 = vpop.f32.mrb[0].mxu0
  %v347 = vadd.f32 0.0, %v346
  %v348 = vpop.f32.mrb[0].mxu0
  %349 = vmatprep.mubr.f32.mxu0 0.0
  %350 = vmatmul.mubr.f32.gmra.mrb[0].mxu0 %v228
  %v351 = vpop.f32.mrb[0].mxu0
  %v352 = vadd.f32 0.0, %v351
  %v353 = vpop.f32.mrb[0].mxu0
  %354 = vdwg.mxu0
  %v355 = vld [vmem:[%s4] sm:$0xff]
  %v356 = vld [vmem:[%s4 + $0x8] sm:$0xff]
  %v357 = vld [vmem:[%s4 + $0x10] sm:$0xff]
  %v358 = vld [vmem:[%s4 + $0x18] sm:$0xff]
  %363 = vrot.lane.b32.xlu0 %v317, 127
  %v364 = vpop.permute.xlu0 %363
  %365 = vrot.lane.b32.xlu0 %v322, 127
  %v366 = vpop.permute.xlu0 %365
  %367 = vrot.lane.b32.xlu0 %v327, 127
  %v368 = vpop.permute.xlu0 %367
  %369 = vrot.lane.b32.xlu0 %v332, 127
  %v370 = vpop.permute.xlu0 %369
  %v375 = vadd.f32 %v297, %v364
  %v376 = vadd.f32 %v302, %v366
  %v377 = vadd.f32 %v307, %v368
  %v378 = vadd.f32 %v312, %v370
  %383 = vrot.lane.b32.xlu0 %v337, 126
  %v384 = vpop.permute.xlu0 %383
  %385 = vrot.lane.b32.xlu0 %v342, 126
  %v386 = vpop.permute.xlu0 %385
  %387 = vrot.lane.b32.xlu0 %v347, 126
  %v388 = vpop.permute.xlu0 %387
  %389 = vrot.lane.b32.xlu0 %v352, 126
  %v390 = vpop.permute.xlu0 %389
  %v395 = vadd.f32 %v375, %v384
  %v396 = vadd.f32 %v376, %v386
  %v397 = vadd.f32 %v377, %v388
  %v398 = vadd.f32 %v378, %v390
  %400 = vset.pattern.permute.xlu0 0
  %401 = vperm.xlu0 %400, %v355
  %v402 = vpop.permute.xlu0 %401
  %405 = vset.pattern.permute.xlu0 0
  %406 = vperm.xlu0 %405, %v356
  %v407 = vpop.permute.xlu0 %406
  %410 = vset.pattern.permute.xlu0 0
  %411 = vperm.xlu0 %410, %v357
  %v412 = vpop.permute.xlu0 %411
  %415 = vset.pattern.permute.xlu0 0
  %416 = vperm.xlu0 %415, %v358
  %v417 = vpop.permute.xlu0 %416
  %v419 = vadd.f32 %v395, %v402
  %v420 = vadd.f32 %v396, %v407
  %v421 = vadd.f32 %v397, %v412
  %v422 = vadd.f32 %v398, %v417
  %v423 = vmax.f32 %v419, 0.0
  %v424 = vmax.f32 %v420, 0.0
  %v425 = vmax.f32 %v421, 0.0
  %v426 = vmax.f32 %v422, 0.0
  %427 = vst.msk [vmem:[%s13] sm:$0xff] %vm193, %v423
  %428 = vst.msk [vmem:[%s13 + $0x8] sm:$0xff] %vm193, %v424
  %429 = vst.msk [vmem:[%s13 + $0x10] sm:$0xff] %vm193, %v425
  %430 = vst.msk [vmem:[%s13 + $0x18] sm:$0xff] %vm193, %v426
  %435 = vrot.lane.b32.xlu0 %v423, 1
  %v436 = vpop.permute.xlu0 %435
  %437 = vrot.lane.b32.xlu0 %v424, 1
  %v438 = vpop.permute.xlu0 %437
  %439 = vrot.lane.b32.xlu0 %v425, 1
  %v440 = vpop.permute.xlu0 %439
  %441 = vrot.lane.b32.xlu0 %v426, 1
  %v442 = vpop.permute.xlu0 %441
  %447 = vst.msk [vmem:[#allocation3] sm:$0xff] %vm158, %v436
  %448 = vst.msk [vmem:[#allocation3 + $0x8] sm:$0xff] %vm158, %v438
  %449 = vst.msk [vmem:[#allocation3 + $0x10] sm:$0xff] %vm158, %v440
  %450 = vst.msk [vmem:[#allocation3 + $0x18] sm:$0xff] %vm158, %v442
  %451 = vrot.lane.b32.xlu0 %v423, 110
  %v452 = vpop.permute.xlu0 %451
  %453 = vrot.lane.b32.xlu0 %v424, 110
  %v454 = vpop.permute.xlu0 %453
  %455 = vrot.lane.b32.xlu0 %v425, 110
  %v456 = vpop.permute.xlu0 %455
  %457 = vrot.lane.b32.xlu0 %v426, 110
  %v458 = vpop.permute.xlu0 %457
  %s463 = scalar_lea.vmem %s13, 160
  %464 = vst.msk [vmem:[%s463] sm:$0xff] %vm193, %v452
  %465 = vst.msk [vmem:[%s463 + $0x8] sm:$0xff] %vm193, %v454
  %466 = vst.msk [vmem:[%s463 + $0x10] sm:$0xff] %vm193, %v456
  %467 = vst.msk [vmem:[%s463 + $0x18] sm:$0xff] %vm193, %v458
  %468 = vst.msk [vmem:[#allocation3] sm:$0xff] %vm176, %v436
  %469 = vst.msk [vmem:[#allocation3 + $0x8] sm:$0xff] %vm176, %v438
  %470 = vst.msk [vmem:[#allocation3 + $0x10] sm:$0xff] %vm176, %v440
  %471 = vst.msk [vmem:[#allocation3 + $0x18] sm:$0xff] %vm176, %v442
  %v472 = vld [vmem:[#allocation3] sm:$0xff]
  %v473 = vld [vmem:[#allocation3 + $0x8] sm:$0xff]
  %v474 = vld [vmem:[#allocation3 + $0x10] sm:$0xff]
  %v475 = vld [vmem:[#allocation3 + $0x18] sm:$0xff]
  %v476 = vld [vmem:[%s5] sm:$0xff]
  %v477 = vld [vmem:[%s5 + $0x8] sm:$0xff]
  %v478 = vld [vmem:[%s5 + $0x10] sm:$0xff]
  %v479 = vld [vmem:[%s5 + $0x18] sm:$0xff]
  %v480 = vld [vmem:[%s5 + $0x20] sm:$0xff]
  %v481 = vld [vmem:[%s5 + $0x28] sm:$0xff]
  %v482 = vld [vmem:[%s5 + $0x30] sm:$0xff]
  %v483 = vld [vmem:[%s5 + $0x38] sm:$0xff]
  %v484 = vld [vmem:[%s5 + $0x40] sm:$0xff]
  %v485 = vld [vmem:[%s5 + $0x48] sm:$0xff]
  %v486 = vld [vmem:[%s5 + $0x50] sm:$0xff]
  %v487 = vld [vmem:[%s5 + $0x58] sm:$0xff]
  %vm488 = vcmask 261120
  %v490 = vsel %vm488, %v476, 0
  %v493 = vsel %vm488, %v477, 0
  %v496 = vsel %vm488, %v478, 0
  %v499 = vsel %vm488, %v479, 0
  %v502 = vsel %vm488, %v480, 0
  %v505 = vsel %vm488, %v481, 0
  %v508 = vsel %vm488, %v482, 0
  %v511 = vsel %vm488, %v483, 0
  %v514 = vsel %vm488, %v484, 0
  %v517 = vsel %vm488, %v485, 0
  %v520 = vsel %vm488, %v486, 0
  %v523 = vsel %vm488, %v487, 0
  %525 = vmatprep.subr.mxu0 0.0
  %526 = vmatpush1.msra.mxu0 %v472
  %527 = vmatprep.subr.mxu0 0.0
  %528 = vmatpush1.msra.mxu0 %v473
  %529 = vmatprep.subr.mxu0 0.0
  %530 = vmatpush1.msra.mxu0 %v474
  %531 = vmatprep.subr.mxu0 0.0
  %532 = vmatpush1.msra.mxu0 %v475
  %533 = vmatprep.subr.mxu0 0.0
  %534 = vmatpush1.msra.mxu0 0.0
  %535 = vmatprep.subr.mxu0 0.0
  %536 = vmatpush1.msra.mxu0 0.0
  %537 = vmatprep.subr.mxu0 0.0
  %538 = vmatpush1.msra.mxu0 0.0
  %539 = vmatprep.subr.mxu0 0.0
  %540 = vmatpush1.msra.mxu0 0.0
  %541 = vmatprep.subr.mxu0 0.0
  %542 = vmatpush1.msra.mxu0 0.0
  %543 = vmatprep.subr.mxu0 0.0
  %544 = vmatpush1.msra.mxu0 0.0
  %545 = vmatprep.subr.mxu0 0.0
  %546 = vmatpush1.msra.mxu0 0.0
  %547 = vmatprep.subr.mxu0 0.0
  %548 = vmatpush1.msra.mxu0 0.0
  %549 = vmatprep.subr.mxu0 0.0
  %550 = vmatpush1.msra.mxu0 0.0
  %551 = vmatprep.subr.mxu0 0.0
  %552 = vmatpush1.msra.mxu0 0.0
  %553 = vmatprep.subr.mxu0 0.0
  %554 = vmatpush1.msra.mxu0 0.0
  %555 = vmatprep.subr.mxu0 0.0
  %556 = vmatpush1.msra.mxu0 0.0
  %557 = vmatprep.subr.mxu0 0.0
  %558 = vmatpush1.msra.mxu0 0.0
  %559 = vmatprep.subr.mxu0 0.0
  %560 = vmatpush1.msra.mxu0 0.0
  %561 = vmatprep.subr.mxu0 0.0
  %562 = vmatpush1.msra.mxu0 0.0
  %563 = vmatprep.subr.mxu0 0.0
  %564 = vmatpush1.msra.mxu0 0.0
  %565 = vmatprep.subr.mxu0 0.0
  %566 = vmatpush1.msra.mxu0 0.0
  %567 = vmatprep.subr.mxu0 0.0
  %568 = vmatpush1.msra.mxu0 0.0
  %569 = vmatprep.subr.mxu0 0.0
  %570 = vmatpush1.msra.mxu0 0.0
  %571 = vmatprep.subr.mxu0 0.0
  %572 = vmatpush1.msra.mxu0 0.0
  %573 = vmatprep.subr.mxu0 0.0
  %574 = vmatpush1.msra.mxu0 0.0
  %575 = vmatprep.subr.mxu0 0.0
  %576 = vmatpush1.msra.mxu0 0.0
  %577 = vmatprep.subr.mxu0 0.0
  %578 = vmatpush1.msra.mxu0 0.0
  %579 = vmatprep.subr.mxu0 0.0
  %580 = vmatpush1.msra.mxu0 0.0
  %581 = vmatprep.subr.mxu0 0.0
  %582 = vmatpush1.msra.mxu0 0.0
  %583 = vmatprep.subr.mxu0 0.0
  %584 = vmatpush1.msra.mxu0 0.0
  %585 = vmatprep.subr.mxu0 0.0
  %586 = vmatpush1.msra.mxu0 0.0
  %587 = vmatprep.subr.mxu0 0.0
  %588 = vmatpush1.msra.mxu0 0.0
  %589 = vmatprep.mubr.f32.mxu0 0.0
  %590 = vmatmul.mubr.f32.gmra.mrb[0].mxu0 %v490
  %v591 = vpop.f32.mrb[0].mxu0
  %v592 = vadd.f32 0.0, %v591
  %v593 = vpop.f32.mrb[0].mxu0
  %594 = vmatprep.mubr.f32.mxu0 0.0
  %595 = vmatmul.mubr.f32.gmra.mrb[0].mxu0 %v493
  %v596 = vpop.f32.mrb[0].mxu0
  %v597 = vadd.f32 0.0, %v596
  %v598 = vpop.f32.mrb[0].mxu0
  %599 = vmatprep.mubr.f32.mxu0 0.0
  %600 = vmatmul.mubr.f32.gmra.mrb[0].mxu0 %v496
  %v601 = vpop.f32.mrb[0].mxu0
  %v602 = vadd.f32 0.0, %v601
  %v603 = vpop.f32.mrb[0].mxu0
  %604 = vmatprep.mubr.f32.mxu0 0.0
  %605 = vmatmul.mubr.f32.gmra.mrb[0].mxu0 %v499
  %v606 = vpop.f32.mrb[0].mxu0
  %v607 = vadd.f32 0.0, %v606
  %v608 = vpop.f32.mrb[0].mxu0
  %609 = vmatprep.mubr.f32.mxu0 0.0
  %610 = vmatmul.mubr.f32.gmra.mrb[0].mxu0 %v502
  %v611 = vpop.f32.mrb[0].mxu0
  %v612 = vadd.f32 0.0, %v611
  %v613 = vpop.f32.mrb[0].mxu0
  %614 = vmatprep.mubr.f32.mxu0 0.0
  %615 = vmatmul.mubr.f32.gmra.mrb[0].mxu0 %v505
  %v616 = vpop.f32.mrb[0].mxu0
  %v617 = vadd.f32 0.0, %v616
  %v618 = vpop.f32.mrb[0].mxu0
  %619 = vmatprep.mubr.f32.mxu0 0.0
  %620 = vmatmul.mubr.f32.gmra.mrb[0].mxu0 %v508
  %v621 = vpop.f32.mrb[0].mxu0
  %v622 = vadd.f32 0.0, %v621
  %v623 = vpop.f32.mrb[0].mxu0
  %624 = vmatprep.mubr.f32.mxu0 0.0
  %625 = vmatmul.mubr.f32.gmra.mrb[0].mxu0 %v511
  %v626 = vpop.f32.mrb[0].mxu0
  %v627 = vadd.f32 0.0, %v626
  %v628 = vpop.f32.mrb[0].mxu0
  %629 = vmatprep.mubr.f32.mxu0 0.0
  %630 = vmatmul.mubr.f32.gmra.mrb[0].mxu0 %v514
  %v631 = vpop.f32.mrb[0].mxu0
  %v632 = vadd.f32 0.0, %v631
  %v633 = vpop.f32.mrb[0].mxu0
  %634 = vmatprep.mubr.f32.mxu0 0.0
  %635 = vmatmul.mubr.f32.gmra.mrb[0].mxu0 %v517
  %v636 = vpop.f32.mrb[0].mxu0
  %v637 = vadd.f32 0.0, %v636
  %v638 = vpop.f32.mrb[0].mxu0
  %639 = vmatprep.mubr.f32.mxu0 0.0
  %640 = vmatmul.mubr.f32.gmra.mrb[0].mxu0 %v520
  %v641 = vpop.f32.mrb[0].mxu0
  %v642 = vadd.f32 0.0, %v641
  %v643 = vpop.f32.mrb[0].mxu0
  %644 = vmatprep.mubr.f32.mxu0 0.0
  %645 = vmatmul.mubr.f32.gmra.mrb[0].mxu0 %v523
  %v646 = vpop.f32.mrb[0].mxu0
  %v647 = vadd.f32 0.0, %v646
  %v648 = vpop.f32.mrb[0].mxu0
  %649 = vdwg.mxu0
  %v650 = vld [vmem:[%s6] sm:$0xff]
  %v651 = vld [vmem:[%s6 + $0x8] sm:$0xff]
  %v652 = vld [vmem:[%s6 + $0x10] sm:$0xff]
  %v653 = vld [vmem:[%s6 + $0x18] sm:$0xff]
  %658 = vrot.lane.b32.xlu0 %v612, 127
  %v659 = vpop.permute.xlu0 %658
  %660 = vrot.lane.b32.xlu0 %v617, 127
  %v661 = vpop.permute.xlu0 %660
  %662 = vrot.lane.b32.xlu0 %v622, 127
  %v663 = vpop.permute.xlu0 %662
  %664 = vrot.lane.b32.xlu0 %v627, 127
  %v665 = vpop.permute.xlu0 %664
  %v670 = vadd.f32 %v592, %v659
  %v671 = vadd.f32 %v597, %v661
  %v672 = vadd.f32 %v602, %v663
  %v673 = vadd.f32 %v607, %v665
  %678 = vrot.lane.b32.xlu0 %v632, 126
  %v679 = vpop.permute.xlu0 %678
  %680 = vrot.lane.b32.xlu0 %v637, 126
  %v681 = vpop.permute.xlu0 %680
  %682 = vrot.lane.b32.xlu0 %v642, 126
  %v683 = vpop.permute.xlu0 %682
  %684 = vrot.lane.b32.xlu0 %v647, 126
  %v685 = vpop.permute.xlu0 %684
  %v690 = vadd.f32 %v670, %v679
  %v691 = vadd.f32 %v671, %v681
  %v692 = vadd.f32 %v672, %v683
  %v693 = vadd.f32 %v673, %v685
  %695 = vset.pattern.permute.xlu0 0
  %696 = vperm.xlu0 %695, %v650
  %v697 = vpop.permute.xlu0 %696
  %700 = vset.pattern.permute.xlu0 0
  %701 = vperm.xlu0 %700, %v651
  %v702 = vpop.permute.xlu0 %701
  %705 = vset.pattern.permute.xlu0 0
  %706 = vperm.xlu0 %705, %v652
  %v707 = vpop.permute.xlu0 %706
  %710 = vset.pattern.permute.xlu0 0
  %711 = vperm.xlu0 %710, %v653
  %v712 = vpop.permute.xlu0 %711
  %v714 = vadd.f32 %v690, %v697
  %v715 = vadd.f32 %v691, %v702
  %v716 = vadd.f32 %v692, %v707
  %v717 = vadd.f32 %v693, %v712
  %v718 = vmax.f32 %v714, 0.0
  %v719 = vmax.f32 %v715, 0.0
  %v720 = vmax.f32 %v716, 0.0
  %v721 = vmax.f32 %v717, 0.0
  %722 = vst.msk [vmem:[%s13 + $0x20] sm:$0xff] %vm193, %v718
  %723 = vst.msk [vmem:[%s13 + $0x28] sm:$0xff] %vm193, %v719
  %724 = vst.msk [vmem:[%s13 + $0x30] sm:$0xff] %vm193, %v720
  %725 = vst.msk [vmem:[%s13 + $0x38] sm:$0xff] %vm193, %v721
  %730 = vrot.lane.b32.xlu0 %v718, 1
  %v731 = vpop.permute.xlu0 %730
  %732 = vrot.lane.b32.xlu0 %v719, 1
  %v733 = vpop.permute.xlu0 %732
  %734 = vrot.lane.b32.xlu0 %v720, 1
  %v735 = vpop.permute.xlu0 %734
  %736 = vrot.lane.b32.xlu0 %v721, 1
  %v737 = vpop.permute.xlu0 %736
  %742 = vst.msk [vmem:[#allocation3 + $0x20] sm:$0xff] %vm158, %v731
  %743 = vst.msk [vmem:[#allocation3 + $0x28] sm:$0xff] %vm158, %v733
  %744 = vst.msk [vmem:[#allocation3 + $0x30] sm:$0xff] %vm158, %v735
  %745 = vst.msk [vmem:[#allocation3 + $0x38] sm:$0xff] %vm158, %v737
  %746 = vrot.lane.b32.xlu0 %v718, 110
  %v747 = vpop.permute.xlu0 %746
  %748 = vrot.lane.b32.xlu0 %v719, 110
  %v749 = vpop.permute.xlu0 %748
  %750 = vrot.lane.b32.xlu0 %v720, 110
  %v751 = vpop.permute.xlu0 %750
  %752 = vrot.lane.b32.xlu0 %v721, 110
  %v753 = vpop.permute.xlu0 %752
  %758 = vst.msk [vmem:[%s463 + $0x20] sm:$0xff] %vm193, %v747
  %759 = vst.msk [vmem:[%s463 + $0x28] sm:$0xff] %vm193, %v749
  %760 = vst.msk [vmem:[%s463 + $0x30] sm:$0xff] %vm193, %v751
  %761 = vst.msk [vmem:[%s463 + $0x38] sm:$0xff] %vm193, %v753
  %762 = vst.msk [vmem:[#allocation3 + $0x20] sm:$0xff] %vm176, %v731
  %763 = vst.msk [vmem:[#allocation3 + $0x28] sm:$0xff] %vm176, %v733
  %764 = vst.msk [vmem:[#allocation3 + $0x30] sm:$0xff] %vm176, %v735
  %765 = vst.msk [vmem:[#allocation3 + $0x38] sm:$0xff] %vm176, %v737
  %v766 = vld [vmem:[#allocation3] sm:$0xff]
  %v767 = vld [vmem:[#allocation3 + $0x8] sm:$0xff]
  %v768 = vld [vmem:[#allocation3 + $0x10] sm:$0xff]
  %v769 = vld [vmem:[#allocation3 + $0x18] sm:$0xff]
  %v770 = vld [vmem:[#allocation3 + $0x20] sm:$0xff]
  %v771 = vld [vmem:[#allocation3 + $0x28] sm:$0xff]
  %v772 = vld [vmem:[#allocation3 + $0x30] sm:$0xff]
  %v773 = vld [vmem:[#allocation3 + $0x38] sm:$0xff]
  %v774 = vld [vmem:[%s7] sm:$0xff]
  %v775 = vld [vmem:[%s7 + $0x8] sm:$0xff]
  %v776 = vld [vmem:[%s7 + $0x10] sm:$0xff]
  %v777 = vld [vmem:[%s7 + $0x18] sm:$0xff]
  %v778 = vld [vmem:[%s7 + $0x20] sm:$0xff]
  %v779 = vld [vmem:[%s7 + $0x28] sm:$0xff]
  %v780 = vld [vmem:[%s7 + $0x30] sm:$0xff]
  %v781 = vld [vmem:[%s7 + $0x38] sm:$0xff]
  %v782 = vld [vmem:[%s7 + $0x40] sm:$0xff]
  %v783 = vld [vmem:[%s7 + $0x48] sm:$0xff]
  %v784 = vld [vmem:[%s7 + $0x50] sm:$0xff]
  %v785 = vld [vmem:[%s7 + $0x58] sm:$0xff]
  %vm786 = vcmask 523264
  %v788 = vsel %vm786, %v774, 0
  %v791 = vsel %vm786, %v775, 0
  %v794 = vsel %vm786, %v776, 0
  %v797 = vsel %vm786, %v777, 0
  %v800 = vsel %vm786, %v778, 0
  %v803 = vsel %vm786, %v779, 0
  %v806 = vsel %vm786, %v780, 0
  %v809 = vsel %vm786, %v781, 0
  %v812 = vsel %vm786, %v782, 0
  %v815 = vsel %vm786, %v783, 0
  %v818 = vsel %vm786, %v784, 0
  %v821 = vsel %vm786, %v785, 0
  %823 = vmatprep.subr.mxu0 0.0
  %824 = vmatpush1.msra.mxu0 %v766
  %825 = vmatprep.subr.mxu0 0.0
  %826 = vmatpush1.msra.mxu0 %v767
  %827 = vmatprep.subr.mxu0 0.0
  %828 = vmatpush1.msra.mxu0 %v768
  %829 = vmatprep.subr.mxu0 0.0
  %830 = vmatpush1.msra.mxu0 %v769
  %831 = vmatprep.subr.mxu0 0.0
  %832 = vmatpush1.msra.mxu0 %v770
  %833 = vmatprep.subr.mxu0 0.0
  %834 = vmatpush1.msra.mxu0 %v771
  %835 = vmatprep.subr.mxu0 0.0
  %836 = vmatpush1.msra.mxu0 %v772
  %837 = vmatprep.subr.mxu0 0.0
  %838 = vmatpush1.msra.mxu0 %v773
  %839 = vmatprep.subr.mxu0 0.0
  %840 = vmatpush1.msra.mxu0 0.0
  %841 = vmatprep.subr.mxu0 0.0
  %842 = vmatpush1.msra.mxu0 0.0
  %843 = vmatprep.subr.mxu0 0.0
  %844 = vmatpush1.msra.mxu0 0.0
  %845 = vmatprep.subr.mxu0 0.0
  %846 = vmatpush1.msra.mxu0 0.0
  %847 = vmatprep.subr.mxu0 0.0
  %848 = vmatpush1.msra.mxu0 0.0
  %849 = vmatprep.subr.mxu0 0.0
  %850 = vmatpush1.msra.mxu0 0.0
  %851 = vmatprep.subr.mxu0 0.0
  %852 = vmatpush1.msra.mxu0 0.0
  %853 = vmatprep.subr.mxu0 0.0
  %854 = vmatpush1.msra.mxu0 0.0
  %855 = vmatprep.subr.mxu0 0.0
  %856 = vmatpush1.msra.mxu0 0.0
  %857 = vmatprep.subr.mxu0 0.0
  %858 = vmatpush1.msra.mxu0 0.0
  %859 = vmatprep.subr.mxu0 0.0
  %860 = vmatpush1.msra.mxu0 0.0
  %861 = vmatprep.subr.mxu0 0.0
  %862 = vmatpush1.msra.mxu0 0.0
  %863 = vmatprep.subr.mxu0 0.0
  %864 = vmatpush1.msra.mxu0 0.0
  %865 = vmatprep.subr.mxu0 0.0
  %866 = vmatpush1.msra.mxu0 0.0
  %867 = vmatprep.subr.mxu0 0.0
  %868 = vmatpush1.msra.mxu0 0.0
  %869 = vmatprep.subr.mxu0 0.0
  %870 = vmatpush1.msra.mxu0 0.0
  %871 = vmatprep.subr.mxu0 0.0
  %872 = vmatpush1.msra.mxu0 0.0
  %873 = vmatprep.subr.mxu0 0.0
  %874 = vmatpush1.msra.mxu0 0.0
  %875 = vmatprep.subr.mxu0 0.0
  %876 = vmatpush1.msra.mxu0 0.0
  %877 = vmatprep.subr.mxu0 0.0
  %878 = vmatpush1.msra.mxu0 0.0
  %879 = vmatprep.subr.mxu0 0.0
  %880 = vmatpush1.msra.mxu0 0.0
  %881 = vmatprep.subr.mxu0 0.0
  %882 = vmatpush1.msra.mxu0 0.0
  %883 = vmatprep.subr.mxu0 0.0
  %884 = vmatpush1.msra.mxu0 0.0
  %885 = vmatprep.subr.mxu0 0.0
  %886 = vmatpush1.msra.mxu0 0.0
  %887 = vmatprep.mubr.f32.mxu0 0.0
  %888 = vmatmul.mubr.f32.gmra.mrb[0].mxu0 %v788
  %v889 = vpop.f32.mrb[0].mxu0
  %v890 = vadd.f32 0.0, %v889
  %v891 = vpop.f32.mrb[0].mxu0
  %892 = vmatprep.mubr.f32.mxu0 0.0
  %893 = vmatmul.mubr.f32.gmra.mrb[0].mxu0 %v791
  %v894 = vpop.f32.mrb[0].mxu0
  %v895 = vadd.f32 0.0, %v894
  %v896 = vpop.f32.mrb[0].mxu0
  %897 = vmatprep.mubr.f32.mxu0 0.0
  %898 = vmatmul.mubr.f32.gmra.mrb[0].mxu0 %v794
  %v899 = vpop.f32.mrb[0].mxu0
  %v900 = vadd.f32 0.0, %v899
  %v901 = vpop.f32.mrb[0].mxu0
  %902 = vmatprep.mubr.f32.mxu0 0.0
  %903 = vmatmul.mubr.f32.gmra.mrb[0].mxu0 %v797
  %v904 = vpop.f32.mrb[0].mxu0
  %v905 = vadd.f32 0.0, %v904
  %v906 = vpop.f32.mrb[0].mxu0
  %907 = vmatprep.mubr.f32.mxu0 0.0
  %908 = vmatmul.mubr.f32.gmra.mrb[0].mxu0 %v800
  %v909 = vpop.f32.mrb[0].mxu0
  %v910 = vadd.f32 0.0, %v909
  %v911 = vpop.f32.mrb[0].mxu0
  %912 = vmatprep.mubr.f32.mxu0 0.0
  %913 = vmatmul.mubr.f32.gmra.mrb[0].mxu0 %v803
  %v914 = vpop.f32.mrb[0].mxu0
  %v915 = vadd.f32 0.0, %v914
  %v916 = vpop.f32.mrb[0].mxu0
  %917 = vmatprep.mubr.f32.mxu0 0.0
  %918 = vmatmul.mubr.f32.gmra.mrb[0].mxu0 %v806
  %v919 = vpop.f32.mrb[0].mxu0
  %v920 = vadd.f32 0.0, %v919
  %v921 = vpop.f32.mrb[0].mxu0
  %922 = vmatprep.mubr.f32.mxu0 0.0
  %923 = vmatmul.mubr.f32.gmra.mrb[0].mxu0 %v809
  %v924 = vpop.f32.mrb[0].mxu0
  %v925 = vadd.f32 0.0, %v924
  %v926 = vpop.f32.mrb[0].mxu0
  %927 = vmatprep.mubr.f32.mxu0 0.0
  %928 = vmatmul.mubr.f32.gmra.mrb[0].mxu0 %v812
  %v929 = vpop.f32.mrb[0].mxu0
  %v930 = vadd.f32 0.0, %v929
  %v931 = vpop.f32.mrb[0].mxu0
  %932 = vmatprep.mubr.f32.mxu0 0.0
  %933 = vmatmul.mubr.f32.gmra.mrb[0].mxu0 %v815
  %v934 = vpop.f32.mrb[0].mxu0
  %v935 = vadd.f32 0.0, %v934
  %v936 = vpop.f32.mrb[0].mxu0
  %937 = vmatprep.mubr.f32.mxu0 0.0
  %938 = vmatmul.mubr.f32.gmra.mrb[0].mxu0 %v818
  %v939 = vpop.f32.mrb[0].mxu0
  %v940 = vadd.f32 0.0, %v939
  %v941 = vpop.f32.mrb[0].mxu0
  %942 = vmatprep.mubr.f32.mxu0 0.0
  %943 = vmatmul.mubr.f32.gmra.mrb[0].mxu0 %v821
  %v944 = vpop.f32.mrb[0].mxu0
  %v945 = vadd.f32 0.0, %v944
  %v946 = vpop.f32.mrb[0].mxu0
  %947 = vdwg.mxu0
  %v948 = vld [vmem:[%s8] sm:$0xff]
  %v949 = vld [vmem:[%s8 + $0x8] sm:$0xff]
  %v950 = vld [vmem:[%s8 + $0x10] sm:$0xff]
  %v951 = vld [vmem:[%s8 + $0x18] sm:$0xff]
  %956 = vrot.lane.b32.xlu0 %v910, 127
  %v957 = vpop.permute.xlu0 %956
  %958 = vrot.lane.b32.xlu0 %v915, 127
  %v959 = vpop.permute.xlu0 %958
  %960 = vrot.lane.b32.xlu0 %v920, 127
  %v961 = vpop.permute.xlu0 %960
  %962 = vrot.lane.b32.xlu0 %v925, 127
  %v963 = vpop.permute.xlu0 %962
  %v968 = vadd.f32 %v890, %v957
  %v969 = vadd.f32 %v895, %v959
  %v970 = vadd.f32 %v900, %v961
  %v971 = vadd.f32 %v905, %v963
  %976 = vrot.lane.b32.xlu0 %v930, 126
  %v977 = vpop.permute.xlu0 %976
  %978 = vrot.lane.b32.xlu0 %v935, 126
  %v979 = vpop.permute.xlu0 %978
  %980 = vrot.lane.b32.xlu0 %v940, 126
  %v981 = vpop.permute.xlu0 %980
  %982 = vrot.lane.b32.xlu0 %v945, 126
  %v983 = vpop.permute.xlu0 %982
  %v988 = vadd.f32 %v968, %v977
  %v989 = vadd.f32 %v969, %v979
  %v990 = vadd.f32 %v970, %v981
  %v991 = vadd.f32 %v971, %v983
  %993 = vset.pattern.permute.xlu0 0
  %994 = vperm.xlu0 %993, %v948
  %v995 = vpop.permute.xlu0 %994
  %998 = vset.pattern.permute.xlu0 0
  %999 = vperm.xlu0 %998, %v949
  %v1000 = vpop.permute.xlu0 %999
  %1003 = vset.pattern.permute.xlu0 0
  %1004 = vperm.xlu0 %1003, %v950
  %v1005 = vpop.permute.xlu0 %1004
  %1008 = vset.pattern.permute.xlu0 0
  %1009 = vperm.xlu0 %1008, %v951
  %v1010 = vpop.permute.xlu0 %1009
  %v1012 = vadd.f32 %v988, %v995
  %v1013 = vadd.f32 %v989, %v1000
  %v1014 = vadd.f32 %v990, %v1005
  %v1015 = vadd.f32 %v991, %v1010
  %v1016 = vmax.f32 %v1012, 0.0
  %v1017 = vmax.f32 %v1013, 0.0
  %v1018 = vmax.f32 %v1014, 0.0
  %v1019 = vmax.f32 %v1015, 0.0
  %1020 = vst.msk [vmem:[%s13 + $0x40] sm:$0xff] %vm193, %v1016
  %1021 = vst.msk [vmem:[%s13 + $0x48] sm:$0xff] %vm193, %v1017
  %1022 = vst.msk [vmem:[%s13 + $0x50] sm:$0xff] %vm193, %v1018
  %1023 = vst.msk [vmem:[%s13 + $0x58] sm:$0xff] %vm193, %v1019
  %1028 = vrot.lane.b32.xlu0 %v1016, 1
  %v1029 = vpop.permute.xlu0 %1028
  %1030 = vrot.lane.b32.xlu0 %v1017, 1
  %v1031 = vpop.permute.xlu0 %1030
  %1032 = vrot.lane.b32.xlu0 %v1018, 1
  %v1033 = vpop.permute.xlu0 %1032
  %1034 = vrot.lane.b32.xlu0 %v1019, 1
  %v1035 = vpop.permute.xlu0 %1034
  %1040 = vst.msk [vmem:[#allocation3 + $0x40] sm:$0xff] %vm158, %v1029
  %1041 = vst.msk [vmem:[#allocation3 + $0x48] sm:$0xff] %vm158, %v1031
  %1042 = vst.msk [vmem:[#allocation3 + $0x50] sm:$0xff] %vm158, %v1033
  %1043 = vst.msk [vmem:[#allocation3 + $0x58] sm:$0xff] %vm158, %v1035
  %1044 = vrot.lane.b32.xlu0 %v1016, 110
  %v1045 = vpop.permute.xlu0 %1044
  %1046 = vrot.lane.b32.xlu0 %v1017, 110
  %v1047 = vpop.permute.xlu0 %1046
  %1048 = vrot.lane.b32.xlu0 %v1018, 110
  %v1049 = vpop.permute.xlu0 %1048
  %1050 = vrot.lane.b32.xlu0 %v1019, 110
  %v1051 = vpop.permute.xlu0 %1050
  %1056 = vst.msk [vmem:[%s463 + $0x40] sm:$0xff] %vm193, %v1045
  %1057 = vst.msk [vmem:[%s463 + $0x48] sm:$0xff] %vm193, %v1047
  %1058 = vst.msk [vmem:[%s463 + $0x50] sm:$0xff] %vm193, %v1049
  %1059 = vst.msk [vmem:[%s463 + $0x58] sm:$0xff] %vm193, %v1051
  %1060 = vst.msk [vmem:[#allocation3 + $0x40] sm:$0xff] %vm176, %v1029
  %1061 = vst.msk [vmem:[#allocation3 + $0x48] sm:$0xff] %vm176, %v1031
  %1062 = vst.msk [vmem:[#allocation3 + $0x50] sm:$0xff] %vm176, %v1033
  %1063 = vst.msk [vmem:[#allocation3 + $0x58] sm:$0xff] %vm176, %v1035
  %v1064 = vld [vmem:[#allocation3] sm:$0xff]
  %v1065 = vld [vmem:[#allocation3 + $0x8] sm:$0xff]
  %v1066 = vld [vmem:[#allocation3 + $0x10] sm:$0xff]
  %v1067 = vld [vmem:[#allocation3 + $0x18] sm:$0xff]
  %v1068 = vld [vmem:[#allocation3 + $0x20] sm:$0xff]
  %v1069 = vld [vmem:[#allocation3 + $0x28] sm:$0xff]
  %v1070 = vld [vmem:[#allocation3 + $0x30] sm:$0xff]
  %v1071 = vld [vmem:[#allocation3 + $0x38] sm:$0xff]
  %v1072 = vld [vmem:[#allocation3 + $0x40] sm:$0xff]
  %v1073 = vld [vmem:[#allocation3 + $0x48] sm:$0xff]
  %v1074 = vld [vmem:[#allocation3 + $0x50] sm:$0xff]
  %v1075 = vld [vmem:[#allocation3 + $0x58] sm:$0xff]
  %v1076 = vld [vmem:[%s9] sm:$0xff]
  %v1077 = vld [vmem:[%s9 + $0x8] sm:$0xff]
  %v1078 = vld [vmem:[%s9 + $0x10] sm:$0xff]
  %v1079 = vld [vmem:[%s9 + $0x18] sm:$0xff]
  %v1080 = vld [vmem:[%s9 + $0x20] sm:$0xff]
  %v1081 = vld [vmem:[%s9 + $0x28] sm:$0xff]
  %v1082 = vld [vmem:[%s9 + $0x30] sm:$0xff]
  %v1083 = vld [vmem:[%s9 + $0x38] sm:$0xff]
  %v1084 = vld [vmem:[%s9 + $0x40] sm:$0xff]
  %v1085 = vld [vmem:[%s9 + $0x48] sm:$0xff]
  %v1086 = vld [vmem:[%s9 + $0x50] sm:$0xff]
  %v1087 = vld [vmem:[%s9 + $0x58] sm:$0xff]
  %vm1088 = vcmask 785408
  %v1090 = vsel %vm1088, %v1076, 0
  %v1093 = vsel %vm1088, %v1077, 0
  %v1096 = vsel %vm1088, %v1078, 0
  %v1099 = vsel %vm1088, %v1079, 0
  %v1102 = vsel %vm1088, %v1080, 0
  %v1105 = vsel %vm1088, %v1081, 0
  %v1108 = vsel %vm1088, %v1082, 0
  %v1111 = vsel %vm1088, %v1083, 0
  %v1114 = vsel %vm1088, %v1084, 0
  %v1117 = vsel %vm1088, %v1085, 0
  %v1120 = vsel %vm1088, %v1086, 0
  %v1123 = vsel %vm1088, %v1087, 0
  %1125 = vmatprep.subr.mxu0 0.0
  %1126 = vmatpush1.msra.mxu0 %v1064
  %1127 = vmatprep.subr.mxu0 0.0
  %1128 = vmatpush1.msra.mxu0 %v1065
  %1129 = vmatprep.subr.mxu0 0.0
  %1130 = vmatpush1.msra.mxu0 %v1066
  %1131 = vmatprep.subr.mxu0 0.0
  %1132 = vmatpush1.msra.mxu0 %v1067
  %1133 = vmatprep.subr.mxu0 0.0
  %1134 = vmatpush1.msra.mxu0 %v1068
  %1135 = vmatprep.subr.mxu0 0.0
  %1136 = vmatpush1.msra.mxu0 %v1069
  %1137 = vmatprep.subr.mxu0 0.0
  %1138 = vmatpush1.msra.mxu0 %v1070
  %1139 = vmatprep.subr.mxu0 0.0
  %1140 = vmatpush1.msra.mxu0 %v1071
  %1141 = vmatprep.subr.mxu0 0.0
  %1142 = vmatpush1.msra.mxu0 %v1072
  %1143 = vmatprep.subr.mxu0 0.0
  %1144 = vmatpush1.msra.mxu0 %v1073
  %1145 = vmatprep.subr.mxu0 0.0
  %1146 = vmatpush1.msra.mxu0 %v1074
  %1147 = vmatprep.subr.mxu0 0.0
  %1148 = vmatpush1.msra.mxu0 %v1075
  %1149 = vmatprep.subr.mxu0 0.0
  %1150 = vmatpush1.msra.mxu0 0.0
  %1151 = vmatprep.subr.mxu0 0.0
  %1152 = vmatpush1.msra.mxu0 0.0
  %1153 = vmatprep.subr.mxu0 0.0
  %1154 = vmatpush1.msra.mxu0 0.0
  %1155 = vmatprep.subr.mxu0 0.0
  %1156 = vmatpush1.msra.mxu0 0.0
  %1157 = vmatprep.subr.mxu0 0.0
  %1158 = vmatpush1.msra.mxu0 0.0
  %1159 = vmatprep.subr.mxu0 0.0
  %1160 = vmatpush1.msra.mxu0 0.0
  %1161 = vmatprep.subr.mxu0 0.0
  %1162 = vmatpush1.msra.mxu0 0.0
  %1163 = vmatprep.subr.mxu0 0.0
  %1164 = vmatpush1.msra.mxu0 0.0
  %1165 = vmatprep.subr.mxu0 0.0
  %1166 = vmatpush1.msra.mxu0 0.0
  %1167 = vmatprep.subr.mxu0 0.0
  %1168 = vmatpush1.msra.mxu0 0.0
  %1169 = vmatprep.subr.mxu0 0.0
  %1170 = vmatpush1.msra.mxu0 0.0
  %1171 = vmatprep.subr.mxu0 0.0
  %1172 = vmatpush1.msra.mxu0 0.0
  %1173 = vmatprep.subr.mxu0 0.0
  %1174 = vmatpush1.msra.mxu0 0.0
  %1175 = vmatprep.subr.mxu0 0.0
  %1176 = vmatpush1.msra.mxu0 0.0
  %1177 = vmatprep.subr.mxu0 0.0
  %1178 = vmatpush1.msra.mxu0 0.0
  %1179 = vmatprep.subr.mxu0 0.0
  %1180 = vmatpush1.msra.mxu0 0.0
  %1181 = vmatprep.subr.mxu0 0.0
  %1182 = vmatpush1.msra.mxu0 0.0
  %1183 = vmatprep.subr.mxu0 0.0
  %1184 = vmatpush1.msra.mxu0 0.0
  %1185 = vmatprep.subr.mxu0 0.0
  %1186 = vmatpush1.msra.mxu0 0.0
  %1187 = vmatprep.subr.mxu0 0.0
  %1188 = vmatpush1.msra.mxu0 0.0
  %1189 = vmatprep.mubr.f32.mxu0 0.0
  %1190 = vmatmul.mubr.f32.gmra.mrb[0].mxu0 %v1090
  %v1191 = vpop.f32.mrb[0].mxu0
  %v1192 = vadd.f32 0.0, %v1191
  %v1193 = vpop.f32.mrb[0].mxu0
  %1194 = vmatprep.mubr.f32.mxu0 0.0
  %1195 = vmatmul.mubr.f32.gmra.mrb[0].mxu0 %v1093
  %v1196 = vpop.f32.mrb[0].mxu0
  %v1197 = vadd.f32 0.0, %v1196
  %v1198 = vpop.f32.mrb[0].mxu0
  %1199 = vmatprep.mubr.f32.mxu0 0.0
  %1200 = vmatmul.mubr.f32.gmra.mrb[0].mxu0 %v1096
  %v1201 = vpop.f32.mrb[0].mxu0
  %v1202 = vadd.f32 0.0, %v1201
  %v1203 = vpop.f32.mrb[0].mxu0
  %1204 = vmatprep.mubr.f32.mxu0 0.0
  %1205 = vmatmul.mubr.f32.gmra.mrb[0].mxu0 %v1099
  %v1206 = vpop.f32.mrb[0].mxu0
  %v1207 = vadd.f32 0.0, %v1206
  %v1208 = vpop.f32.mrb[0].mxu0
  %1209 = vmatprep.mubr.f32.mxu0 0.0
  %1210 = vmatmul.mubr.f32.gmra.mrb[0].mxu0 %v1102
  %v1211 = vpop.f32.mrb[0].mxu0
  %v1212 = vadd.f32 0.0, %v1211
  %v1213 = vpop.f32.mrb[0].mxu0
  %1214 = vmatprep.mubr.f32.mxu0 0.0
  %1215 = vmatmul.mubr.f32.gmra.mrb[0].mxu0 %v1105
  %v1216 = vpop.f32.mrb[0].mxu0
  %v1217 = vadd.f32 0.0, %v1216
  %v1218 = vpop.f32.mrb[0].mxu0
  %1219 = vmatprep.mubr.f32.mxu0 0.0
  %1220 = vmatmul.mubr.f32.gmra.mrb[0].mxu0 %v1108
  %v1221 = vpop.f32.mrb[0].mxu0
  %v1222 = vadd.f32 0.0, %v1221
  %v1223 = vpop.f32.mrb[0].mxu0
  %1224 = vmatprep.mubr.f32.mxu0 0.0
  %1225 = vmatmul.mubr.f32.gmra.mrb[0].mxu0 %v1111
  %v1226 = vpop.f32.mrb[0].mxu0
  %v1227 = vadd.f32 0.0, %v1226
  %v1228 = vpop.f32.mrb[0].mxu0
  %1229 = vmatprep.mubr.f32.mxu0 0.0
  %1230 = vmatmul.mubr.f32.gmra.mrb[0].mxu0 %v1114
  %v1231 = vpop.f32.mrb[0].mxu0
  %v1232 = vadd.f32 0.0, %v1231
  %v1233 = vpop.f32.mrb[0].mxu0
  %1234 = vmatprep.mubr.f32.mxu0 0.0
  %1235 = vmatmul.mubr.f32.gmra.mrb[0].mxu0 %v1117
  %v1236 = vpop.f32.mrb[0].mxu0
  %v1237 = vadd.f32 0.0, %v1236
  %v1238 = vpop.f32.mrb[0].mxu0
  %1239 = vmatprep.mubr.f32.mxu0 0.0
  %1240 = vmatmul.mubr.f32.gmra.mrb[0].mxu0 %v1120
  %v1241 = vpop.f32.mrb[0].mxu0
  %v1242 = vadd.f32 0.0, %v1241
  %v1243 = vpop.f32.mrb[0].mxu0
  %1244 = vmatprep.mubr.f32.mxu0 0.0
  %1245 = vmatmul.mubr.f32.gmra.mrb[0].mxu0 %v1123
  %v1246 = vpop.f32.mrb[0].mxu0
  %v1247 = vadd.f32 0.0, %v1246
  %v1248 = vpop.f32.mrb[0].mxu0
  %1249 = vdwg.mxu0
  %v1250 = vld [vmem:[%s10] sm:$0xff]
  %v1251 = vld [vmem:[%s10 + $0x8] sm:$0xff]
  %v1252 = vld [vmem:[%s10 + $0x10] sm:$0xff]
  %v1253 = vld [vmem:[%s10 + $0x18] sm:$0xff]
  %1258 = vrot.lane.b32.xlu0 %v1212, 127
  %v1259 = vpop.permute.xlu0 %1258
  %1260 = vrot.lane.b32.xlu0 %v1217, 127
  %v1261 = vpop.permute.xlu0 %1260
  %1262 = vrot.lane.b32.xlu0 %v1222, 127
  %v1263 = vpop.permute.xlu0 %1262
  %1264 = vrot.lane.b32.xlu0 %v1227, 127
  %v1265 = vpop.permute.xlu0 %1264
  %v1270 = vadd.f32 %v1192, %v1259
  %v1271 = vadd.f32 %v1197, %v1261
  %v1272 = vadd.f32 %v1202, %v1263
  %v1273 = vadd.f32 %v1207, %v1265
  %1278 = vrot.lane.b32.xlu0 %v1232, 126
  %v1279 = vpop.permute.xlu0 %1278
  %1280 = vrot.lane.b32.xlu0 %v1237, 126
  %v1281 = vpop.permute.xlu0 %1280
  %1282 = vrot.lane.b32.xlu0 %v1242, 126
  %v1283 = vpop.permute.xlu0 %1282
  %1284 = vrot.lane.b32.xlu0 %v1247, 126
  %v1285 = vpop.permute.xlu0 %1284
  %v1290 = vadd.f32 %v1270, %v1279
  %v1291 = vadd.f32 %v1271, %v1281
  %v1292 = vadd.f32 %v1272, %v1283
  %v1293 = vadd.f32 %v1273, %v1285
  %1295 = vset.pattern.permute.xlu0 0
  %1296 = vperm.xlu0 %1295, %v1250
  %v1297 = vpop.permute.xlu0 %1296
  %1300 = vset.pattern.permute.xlu0 0
  %1301 = vperm.xlu0 %1300, %v1251
  %v1302 = vpop.permute.xlu0 %1301
  %1305 = vset.pattern.permute.xlu0 0
  %1306 = vperm.xlu0 %1305, %v1252
  %v1307 = vpop.permute.xlu0 %1306
  %1310 = vset.pattern.permute.xlu0 0
  %1311 = vperm.xlu0 %1310, %v1253
  %v1312 = vpop.permute.xlu0 %1311
  %v1314 = vadd.f32 %v1290, %v1297
  %v1315 = vadd.f32 %v1291, %v1302
  %v1316 = vadd.f32 %v1292, %v1307
  %v1317 = vadd.f32 %v1293, %v1312
  %v1318 = vmax.f32 %v1314, 0.0
  %v1319 = vmax.f32 %v1315, 0.0
  %v1320 = vmax.f32 %v1316, 0.0
  %v1321 = vmax.f32 %v1317, 0.0
  %1322 = vst.msk [vmem:[%s13 + $0x60] sm:$0xff] %vm193, %v1318
  %1323 = vst.msk [vmem:[%s13 + $0x68] sm:$0xff] %vm193, %v1319
  %1324 = vst.msk [vmem:[%s13 + $0x70] sm:$0xff] %vm193, %v1320
  %1325 = vst.msk [vmem:[%s13 + $0x78] sm:$0xff] %vm193, %v1321
  %1330 = vrot.lane.b32.xlu0 %v1318, 1
  %v1331 = vpop.permute.xlu0 %1330
  %1332 = vrot.lane.b32.xlu0 %v1319, 1
  %v1333 = vpop.permute.xlu0 %1332
  %1334 = vrot.lane.b32.xlu0 %v1320, 1
  %v1335 = vpop.permute.xlu0 %1334
  %1336 = vrot.lane.b32.xlu0 %v1321, 1
  %v1337 = vpop.permute.xlu0 %1336
  %1342 = vst.msk [vmem:[#allocation3 + $0x60] sm:$0xff] %vm158, %v1331
  %1343 = vst.msk [vmem:[#allocation3 + $0x68] sm:$0xff] %vm158, %v1333
  %1344 = vst.msk [vmem:[#allocation3 + $0x70] sm:$0xff] %vm158, %v1335
  %1345 = vst.msk [vmem:[#allocation3 + $0x78] sm:$0xff] %vm158, %v1337
  %1346 = vrot.lane.b32.xlu0 %v1318, 110
  %v1347 = vpop.permute.xlu0 %1346
  %1348 = vrot.lane.b32.xlu0 %v1319, 110
  %v1349 = vpop.permute.xlu0 %1348
  %1350 = vrot.lane.b32.xlu0 %v1320, 110
  %v1351 = vpop.permute.xlu0 %1350
  %1352 = vrot.lane.b32.xlu0 %v1321, 110
  %v1353 = vpop.permute.xlu0 %1352
  %1358 = vst.msk [vmem:[%s463 + $0x60] sm:$0xff] %vm193, %v1347
  %1359 = vst.msk [vmem:[%s463 + $0x68] sm:$0xff] %vm193, %v1349
  %1360 = vst.msk [vmem:[%s463 + $0x70] sm:$0xff] %vm193, %v1351
  %1361 = vst.msk [vmem:[%s463 + $0x78] sm:$0xff] %vm193, %v1353
  %1362 = vst.msk [vmem:[#allocation3 + $0x60] sm:$0xff] %vm176, %v1331
  %1363 = vst.msk [vmem:[#allocation3 + $0x68] sm:$0xff] %vm176, %v1333
  %1364 = vst.msk [vmem:[#allocation3 + $0x70] sm:$0xff] %vm176, %v1335
  %1365 = vst.msk [vmem:[#allocation3 + $0x78] sm:$0xff] %vm176, %v1337
  %v1366 = vld [vmem:[#allocation3] sm:$0xff]
  %v1367 = vld [vmem:[#allocation3 + $0x8] sm:$0xff]
  %v1368 = vld [vmem:[#allocation3 + $0x10] sm:$0xff]
  %v1369 = vld [vmem:[#allocation3 + $0x18] sm:$0xff]
  %v1370 = vld [vmem:[#allocation3 + $0x20] sm:$0xff]
  %v1371 = vld [vmem:[#allocation3 + $0x28] sm:$0xff]
  %v1372 = vld [vmem:[#allocation3 + $0x30] sm:$0xff]
  %v1373 = vld [vmem:[#allocation3 + $0x38] sm:$0xff]
  %v1374 = vld [vmem:[#allocation3 + $0x40] sm:$0xff]
  %v1375 = vld [vmem:[#allocation3 + $0x48] sm:$0xff]
  %v1376 = vld [vmem:[#allocation3 + $0x50] sm:$0xff]
  %v1377 = vld [vmem:[#allocation3 + $0x58] sm:$0xff]
  %v1378 = vld [vmem:[#allocation3 + $0x60] sm:$0xff]
  %v1379 = vld [vmem:[#allocation3 + $0x68] sm:$0xff]
  %v1380 = vld [vmem:[#allocation3 + $0x70] sm:$0xff]
  %v1381 = vld [vmem:[#allocation3 + $0x78] sm:$0xff]
  %v1382 = vld [vmem:[%s11] sm:$0xff]
  %v1383 = vld [vmem:[%s11 + $0x8] sm:$0xff]
  %v1384 = vld [vmem:[%s11 + $0x10] sm:$0xff]
  %v1385 = vld [vmem:[%s11 + $0x18] sm:$0xff]
  %v1386 = vld [vmem:[%s11 + $0x20] sm:$0xff]
  %v1387 = vld [vmem:[%s11 + $0x28] sm:$0xff]
  %v1388 = vld [vmem:[%s11 + $0x30] sm:$0xff]
  %v1389 = vld [vmem:[%s11 + $0x38] sm:$0xff]
  %v1390 = vld [vmem:[%s11 + $0x40] sm:$0xff]
  %v1391 = vld [vmem:[%s11 + $0x48] sm:$0xff]
  %v1392 = vld [vmem:[%s11 + $0x50] sm:$0xff]
  %v1393 = vld [vmem:[%s11 + $0x58] sm:$0xff]
  %1394 = vmatprep.subr.mxu0 0.0
  %1395 = vmatpush1.msra.mxu0 %v1366
  %1396 = vmatprep.subr.mxu0 0.0
  %1397 = vmatpush1.msra.mxu0 %v1367
  %1398 = vmatprep.subr.mxu0 0.0
  %1399 = vmatpush1.msra.mxu0 %v1368
  %1400 = vmatprep.subr.mxu0 0.0
  %1401 = vmatpush1.msra.mxu0 %v1369
  %1402 = vmatprep.subr.mxu0 0.0
  %1403 = vmatpush1.msra.mxu0 %v1370
  %1404 = vmatprep.subr.mxu0 0.0
  %1405 = vmatpush1.msra.mxu0 %v1371
  %1406 = vmatprep.subr.mxu0 0.0
  %1407 = vmatpush1.msra.mxu0 %v1372
  %1408 = vmatprep.subr.mxu0 0.0
  %1409 = vmatpush1.msra.mxu0 %v1373
  %1410 = vmatprep.subr.mxu0 0.0
  %1411 = vmatpush1.msra.mxu0 %v1374
  %1412 = vmatprep.subr.mxu0 0.0
  %1413 = vmatpush1.msra.mxu0 %v1375
  %1414 = vmatprep.subr.mxu0 0.0
  %1415 = vmatpush1.msra.mxu0 %v1376
  %1416 = vmatprep.subr.mxu0 0.0
  %1417 = vmatpush1.msra.mxu0 %v1377
  %1418 = vmatprep.subr.mxu0 0.0
  %1419 = vmatpush1.msra.mxu0 %v1378
  %1420 = vmatprep.subr.mxu0 0.0
  %1421 = vmatpush1.msra.mxu0 %v1379
  %1422 = vmatprep.subr.mxu0 0.0
  %1423 = vmatpush1.msra.mxu0 %v1380
  %1424 = vmatprep.subr.mxu0 0.0
  %1425 = vmatpush1.msra.mxu0 %v1381
  %1426 = vmatprep.subr.mxu0 0.0
  %1427 = vmatpush1.msra.mxu0 0.0
  %1428 = vmatprep.subr.mxu0 0.0
  %1429 = vmatpush1.msra.mxu0 0.0
  %1430 = vmatprep.subr.mxu0 0.0
  %1431 = vmatpush1.msra.mxu0 0.0
  %1432 = vmatprep.subr.mxu0 0.0
  %1433 = vmatpush1.msra.mxu0 0.0
  %1434 = vmatprep.subr.mxu0 0.0
  %1435 = vmatpush1.msra.mxu0 0.0
  %1436 = vmatprep.subr.mxu0 0.0
  %1437 = vmatpush1.msra.mxu0 0.0
  %1438 = vmatprep.subr.mxu0 0.0
  %1439 = vmatpush1.msra.mxu0 0.0
  %1440 = vmatprep.subr.mxu0 0.0
  %1441 = vmatpush1.msra.mxu0 0.0
  %1442 = vmatprep.subr.mxu0 0.0
  %1443 = vmatpush1.msra.mxu0 0.0
  %1444 = vmatprep.subr.mxu0 0.0
  %1445 = vmatpush1.msra.mxu0 0.0
  %1446 = vmatprep.subr.mxu0 0.0
  %1447 = vmatpush1.msra.mxu0 0.0
  %1448 = vmatprep.subr.mxu0 0.0
  %1449 = vmatpush1.msra.mxu0 0.0
  %1450 = vmatprep.subr.mxu0 0.0
  %1451 = vmatpush1.msra.mxu0 0.0
  %1452 = vmatprep.subr.mxu0 0.0
  %1453 = vmatpush1.msra.mxu0 0.0
  %1454 = vmatprep.subr.mxu0 0.0
  %1455 = vmatpush1.msra.mxu0 0.0
  %1456 = vmatprep.subr.mxu0 0.0
  %1457 = vmatpush1.msra.mxu0 0.0
  %1458 = vmatprep.mubr.f32.mxu0 0.0
  %1459 = vmatmul.mubr.f32.gmra.mrb[0].mxu0 %v1382
  %v1460 = vpop.f32.mrb[0].mxu0
  %v1461 = vadd.f32 0.0, %v1460
  %v1462 = vpop.f32.mrb[0].mxu0
  %1463 = vmatprep.mubr.f32.mxu0 0.0
  %1464 = vmatmul.mubr.f32.gmra.mrb[0].mxu0 %v1383
  %v1465 = vpop.f32.mrb[0].mxu0
  %v1466 = vadd.f32 0.0, %v1465
  %v1467 = vpop.f32.mrb[0].mxu0
  %1468 = vmatprep.mubr.f32.mxu0 0.0
  %1469 = vmatmul.mubr.f32.gmra.mrb[0].mxu0 %v1384
  %v1470 = vpop.f32.mrb[0].mxu0
  %v1471 = vadd.f32 0.0, %v1470
  %v1472 = vpop.f32.mrb[0].mxu0
  %1473 = vmatprep.mubr.f32.mxu0 0.0
  %1474 = vmatmul.mubr.f32.gmra.mrb[0].mxu0 %v1385
  %v1475 = vpop.f32.mrb[0].mxu0
  %v1476 = vadd.f32 0.0, %v1475
  %v1477 = vpop.f32.mrb[0].mxu0
  %1478 = vmatprep.mubr.f32.mxu0 0.0
  %1479 = vmatmul.mubr.f32.gmra.mrb[0].mxu0 %v1386
  %v1480 = vpop.f32.mrb[0].mxu0
  %v1481 = vadd.f32 0.0, %v1480
  %v1482 = vpop.f32.mrb[0].mxu0
  %1483 = vmatprep.mubr.f32.mxu0 0.0
  %1484 = vmatmul.mubr.f32.gmra.mrb[0].mxu0 %v1387
  %v1485 = vpop.f32.mrb[0].mxu0
  %v1486 = vadd.f32 0.0, %v1485
  %v1487 = vpop.f32.mrb[0].mxu0
  %1488 = vmatprep.mubr.f32.mxu0 0.0
  %1489 = vmatmul.mubr.f32.gmra.mrb[0].mxu0 %v1388
  %v1490 = vpop.f32.mrb[0].mxu0
  %v1491 = vadd.f32 0.0, %v1490
  %v1492 = vpop.f32.mrb[0].mxu0
  %1493 = vmatprep.mubr.f32.mxu0 0.0
  %1494 = vmatmul.mubr.f32.gmra.mrb[0].mxu0 %v1389
  %v1495 = vpop.f32.mrb[0].mxu0
  %v1496 = vadd.f32 0.0, %v1495
  %v1497 = vpop.f32.mrb[0].mxu0
  %1498 = vmatprep.mubr.f32.mxu0 0.0
  %1499 = vmatmul.mubr.f32.gmra.mrb[0].mxu0 %v1390
  %v1500 = vpop.f32.mrb[0].mxu0
  %v1501 = vadd.f32 0.0, %v1500
  %v1502 = vpop.f32.mrb[0].mxu0
  %1503 = vmatprep.mubr.f32.mxu0 0.0
  %1504 = vmatmul.mubr.f32.gmra.mrb[0].mxu0 %v1391
  %v1505 = vpop.f32.mrb[0].mxu0
  %v1506 = vadd.f32 0.0, %v1505
  %v1507 = vpop.f32.mrb[0].mxu0
  %1508 = vmatprep.mubr.f32.mxu0 0.0
  %1509 = vmatmul.mubr.f32.gmra.mrb[0].mxu0 %v1392
  %v1510 = vpop.f32.mrb[0].mxu0
  %v1511 = vadd.f32 0.0, %v1510
  %v1512 = vpop.f32.mrb[0].mxu0
  %1513 = vmatprep.mubr.f32.mxu0 0.0
  %1514 = vmatmul.mubr.f32.gmra.mrb[0].mxu0 %v1393
  %v1515 = vpop.f32.mrb[0].mxu0
  %v1516 = vadd.f32 0.0, %v1515
  %v1517 = vpop.f32.mrb[0].mxu0
  %1518 = vdwg.mxu0
  %v1519 = vld [vmem:[%s12] sm:$0xff]
  %v1520 = vld [vmem:[%s12 + $0x8] sm:$0xff]
  %v1521 = vld [vmem:[%s12 + $0x10] sm:$0xff]
  %v1522 = vld [vmem:[%s12 + $0x18] sm:$0xff]
  %1527 = vrot.lane.b32.xlu0 %v1481, 127
  %v1528 = vpop.permute.xlu0 %1527
  %1529 = vrot.lane.b32.xlu0 %v1486, 127
  %v1530 = vpop.permute.xlu0 %1529
  %1531 = vrot.lane.b32.xlu0 %v1491, 127
  %v1532 = vpop.permute.xlu0 %1531
  %1533 = vrot.lane.b32.xlu0 %v1496, 127
  %v1534 = vpop.permute.xlu0 %1533
  %v1539 = vadd.f32 %v1461, %v1528
  %v1540 = vadd.f32 %v1466, %v1530
  %v1541 = vadd.f32 %v1471, %v1532
  %v1542 = vadd.f32 %v1476, %v1534
  %1547 = vrot.lane.b32.xlu0 %v1501, 126
  %v1548 = vpop.permute.xlu0 %1547
  %1549 = vrot.lane.b32.xlu0 %v1506, 126
  %v1550 = vpop.permute.xlu0 %1549
  %1551 = vrot.lane.b32.xlu0 %v1511, 126
  %v1552 = vpop.permute.xlu0 %1551
  %1553 = vrot.lane.b32.xlu0 %v1516, 126
  %v1554 = vpop.permute.xlu0 %1553
  %v1559 = vadd.f32 %v1539, %v1548
  %v1560 = vadd.f32 %v1540, %v1550
  %v1561 = vadd.f32 %v1541, %v1552
  %v1562 = vadd.f32 %v1542, %v1554
  %1564 = vset.pattern.permute.xlu0 0
  %1565 = vperm.xlu0 %1564, %v1519
  %v1566 = vpop.permute.xlu0 %1565
  %1569 = vset.pattern.permute.xlu0 0
  %1570 = vperm.xlu0 %1569, %v1520
  %v1571 = vpop.permute.xlu0 %1570
  %1574 = vset.pattern.permute.xlu0 0
  %1575 = vperm.xlu0 %1574, %v1521
  %v1576 = vpop.permute.xlu0 %1575
  %1579 = vset.pattern.permute.xlu0 0
  %1580 = vperm.xlu0 %1579, %v1522
  %v1581 = vpop.permute.xlu0 %1580
  %v1583 = vadd.f32 %v1559, %v1566
  %v1584 = vadd.f32 %v1560, %v1571
  %v1585 = vadd.f32 %v1561, %v1576
  %v1586 = vadd.f32 %v1562, %v1581
  %v1587 = vmax.f32 %v1583, 0.0
  %v1588 = vmax.f32 %v1584, 0.0
  %v1589 = vmax.f32 %v1585, 0.0
  %v1590 = vmax.f32 %v1586, 0.0
  %1591 = vst.msk [vmem:[%s13 + $0x80] sm:$0xff] %vm193, %v1587
  %1592 = vst.msk [vmem:[%s13 + $0x88] sm:$0xff] %vm193, %v1588
  %1593 = vst.msk [vmem:[%s13 + $0x90] sm:$0xff] %vm193, %v1589
  %1594 = vst.msk [vmem:[%s13 + $0x98] sm:$0xff] %vm193, %v1590
  %1599 = vrot.lane.b32.xlu0 %v1587, 110
  %v1600 = vpop.permute.xlu0 %1599
  %1601 = vrot.lane.b32.xlu0 %v1588, 110
  %v1602 = vpop.permute.xlu0 %1601
  %1603 = vrot.lane.b32.xlu0 %v1589, 110
  %v1604 = vpop.permute.xlu0 %1603
  %1605 = vrot.lane.b32.xlu0 %v1590, 110
  %v1606 = vpop.permute.xlu0 %1605
  %1611 = vst.msk [vmem:[%s463 + $0x80] sm:$0xff] %vm193, %v1600
  %1612 = vst.msk [vmem:[%s463 + $0x88] sm:$0xff] %vm193, %v1602
  %1613 = vst.msk [vmem:[%s463 + $0x90] sm:$0xff] %vm193, %v1604
  %1614 = vst.msk [vmem:[%s463 + $0x98] sm:$0xff] %vm193, %v1606
  // Predicated region
  $region54: #{tpu_custom_call.1} parent=0 // pred_check
    _
  $region55: #{tpu_custom_call.1} parent=0 // pred_check_branch
    %1616 = sbr.rel (0) target = $region57
  $region56: #{tpu_custom_call.1} parent=0 // pred_region
    _
  $region57: #{tpu_custom_call.1} parent=0 // pred_fallthru
    _
  // Predicated region
  $region58: #{tpu_custom_call.1} parent=0 // pred_check
    _
  $region59: #{tpu_custom_call.1} parent=0 // pred_check_branch
    %1618 = sbr.rel (0) target = $region61
  $region60: #{tpu_custom_call.1} parent=0 // pred_region
    _
  $region61: #{tpu_custom_call.1} parent=0 // pred_fallthru
    _

</llo_original>
